<compile_context>
chip_gen: v5e
topology: v5e:2x2
jax: 0.10.0
libtpu: 0.0.40
codegen_flags: <defaults>
</compile_context>

<pallas_src>
import jax
import jax.numpy as jnp
from jax.experimental import pallas as pl
from jax.experimental.pallas import tpu as pltpu

# ----------------------------- configuration (small, deterministic) -----------------------------
N_WORD = 50          # len(word2idx)
N_CHAR = 30          # len(char2idx)
N_TAG = 8            # len(tag2idx)  (includes START/STOP)
DIM_EMB_CHAR = 16
DIM_EMB_WORD = 32
DIM_OUT_CHAR = 16    # char conv out channels = 2 * DIM_OUT_CHAR
DIM_OUT_WORD = 32    # word conv out channels = 2 * DIM_OUT_WORD
MAX_LEN_WORD = 16
WINDOW_KERNEL = 3
IDX_PAD_CHAR = 0
IDX_PAD_WORD = 0

C_CHAR = 2 * DIM_OUT_CHAR                  # 32
C_WORD = 2 * DIM_OUT_WORD                  # 64
DIM_IN_WORD = DIM_EMB_WORD + C_CHAR        # 64
KH_CHAR = 3
PAD_CHAR_T = 2                              # conv_char padding=(2, 0)
PAD_WORD_T = WINDOW_KERNEL // 2             # conv1 padding=(wk//2, 0)
LP_CHAR = MAX_LEN_WORD + 2 * PAD_CHAR_T     # 20 time-padded char rows per word
SENTINEL_CHAR = N_CHAR + 1                  # matches no one-hot column -> exact zero row
TAG_PAD = 128                               # lane-dense emission store width

BATCH = 2
SEQ = 8


# ----------------------------------------- Pallas kernel ----------------------------------------
def fused_emission_kernel(chars_ref, words_ref, emb_c_ref, emb_w_ref,
                          wc_ref, bc_ref, ww_ref, bw_ref, wt_ref, bt_ref, o_ref):
    """One batch element: char CNN + max-pool -> concat -> word CNN -> hidden2tag.

    chars_ref: (1, S*LP, 1) int32   per-word time-padded char indices (pad = sentinel)
    words_ref: (1, S, 1)    int32   word indices
    emb_c_ref: (Vc, Ec) f32         char embedding table
    emb_w_ref: (Vw, Ew) f32         word embedding table
    wc_ref:    (KH*Ec, Cc) f32      char conv weight, taps folded into K
    bc_ref:    (1, Cc)  f32
    ww_ref:    (KW*Din, Cw) f32     word conv weight, taps folded into K
    bw_ref:    (1, Cw)  f32
    wt_ref:    (Cw, Tpad) f32       hidden2tag weight, tag dim zero-padded to 128 lanes
    bt_ref:    (1, Tpad) f32
    o_ref:     (1, S, Tpad) f32     emission scores (padded tag lanes)
    """
    s = words_ref.shape[1]
    n_rows = chars_ref.shape[1]
    lp = n_rows // s                         # padded chars per word
    vc, ec = emb_c_ref.shape
    kh = wc_ref.shape[0] // ec
    l_out = lp - kh + 1                      # valid conv positions per word (matches PyTorch)
    vw = emb_w_ref.shape[0]

    # ---- char path: one-hot gather (MXU) -> fused-tap conv (MXU) -> per-word max-pool ----
    c_idx = chars_ref[0]                                                    # (S*LP, 1)
    onehot_c = (c_idx == jax.lax.broadcasted_iota(jnp.int32, (n_rows, vc), 1)
                ).astype(jnp.float32)                                       # (S*LP, Vc)
    pf = jnp.dot(onehot_c, emb_c_ref[...],
                 preferred_element_type=jnp.float32)                        # (S*LP, Ec)
    # im2col: lane-concat of kh shifted views. Tail zero-rows only pad shapes; the rows
    # they feed are never read (positions t >= l_out of the last word are skipped below).
    pf_ext = jnp.concatenate([pf, jnp.zeros((kh - 1, ec), jnp.float32)], axis=0)
    win_c = jnp.concatenate([pf_ext[k:k + n_rows, :] for k in range(kh)], axis=-1)
    conv_c = jnp.dot(win_c, wc_ref[...],
                     preferred_element_type=jnp.float32) + bc_ref[...]      # (S*LP, Cc)
    # MaxPool2d((max_len_word + 2, 1)): per-word max over the l_out valid conv positions
    # (includes the bias-dominated edge rows, exactly like the PyTorch reference).
    char_feat = jnp.concatenate(
        [jnp.max(conv_c[w * lp:w * lp + l_out, :], axis=0, keepdims=True)
         for w in range(s)], axis=0)                                        # (S, Cc)

    # ---- word path: one-hot gather -> concat -> fused-tap conv -> hidden2tag ----
    w_idx = words_ref[0]                                                    # (S, 1)
    onehot_w = (w_idx == jax.lax.broadcasted_iota(jnp.int32, (s, vw), 1)
                ).astype(jnp.float32)                                       # (S, Vw)
    emb_w = jnp.dot(onehot_w, emb_w_ref[...],
                    preferred_element_type=jnp.float32)                     # (S, Ew)

    x = jnp.concatenate([emb_w, char_feat], axis=-1)                        # (S, Din)
    d_in = x.shape[1]
    kw = ww_ref.shape[0] // d_in
    zp = jnp.zeros((kw // 2, d_in), jnp.float32)
    xp = jnp.concatenate([zp, x, zp], axis=0)                               # (S + 2*(kw//2), Din)
    win_w = jnp.concatenate([xp[k:k + s, :] for k in range(kw)], axis=-1)   # (S, KW*Din)
    conv_w = jnp.dot(win_w, ww_ref[...],
                     preferred_element_type=jnp.float32) + bw_ref[...]      # (S, Cw)
    # no nonlinearity in the reference forward(); dropout is identity in eval mode
    o_ref[0] = jnp.dot(conv_w, wt_ref[...],
                       preferred_element_type=jnp.float32) + bt_ref[...]    # (S, Tpad)


# ------------------------------------------- wrapper --------------------------------------------
def bilstm_crf_forward(params, words_batch, chars_batch):
    """Emission scores, mirroring BiLSTM_CRF.forward (cnn/cnn1 modes, eval)."""
    b, s = words_batch.shape

    # Fold conv_char's time padding=(2,0) into the integer index array using an
    # out-of-vocab sentinel (its one-hot row is exactly zero, independent of table contents).
    chars_p = jnp.pad(chars_batch.astype(jnp.int32),
                      ((0, 0), (0, 0), (PAD_CHAR_T, PAD_CHAR_T)),
                      constant_values=SENTINEL_CHAR)                        # (B, S, LP)
    chars_p = chars_p.reshape(b, s * LP_CHAR, 1)
    words_p = words_batch.astype(jnp.int32).reshape(b, s, 1)

    # Taps folded into the contraction dimension; tag weight/bias padded to 128 lanes so the
    # final store is a single unmasked lane-dense block.
    wc2d = params["w_conv_char"].reshape(KH_CHAR * DIM_EMB_CHAR, C_CHAR)
    ww2d = params["w_conv1"].reshape(WINDOW_KERNEL * DIM_IN_WORD, C_WORD)
    wt_pad = jnp.pad(params["w_tag"], ((0, 0), (0, TAG_PAD - N_TAG)))
    bt_pad = jnp.pad(params["b_tag"], ((0, 0), (0, TAG_PAD - N_TAG)))

    def rep2(arr):  # whole 2-D array replicated to every grid step
        return pl.BlockSpec(arr.shape, lambda i: (0, 0))

    emission = pl.pallas_call(
        fused_emission_kernel,
        out_shape=jax.ShapeDtypeStruct((b, s, TAG_PAD), jnp.float32),
        grid=(b,),
        in_specs=[
            pl.BlockSpec((1, s * LP_CHAR, 1), lambda i: (i, 0, 0)),
            pl.BlockSpec((1, s, 1), lambda i: (i, 0, 0)),
            rep2(params["emb_char"]),
            rep2(params["emb_word"]),
            rep2(wc2d),
            rep2(params["b_conv_char"]),
            rep2(ww2d),
            rep2(params["b_conv1"]),
            rep2(wt_pad),
            rep2(bt_pad),
        ],
        out_specs=pl.BlockSpec((1, s, TAG_PAD), lambda i: (i, 0, 0)),
        compiler_params=pltpu.CompilerParams(
            dimension_semantics=("parallel",)),   # v7x: one batch element per TensorCore
    )(chars_p, words_p, params["emb_char"], params["emb_word"],
      wc2d, params["b_conv_char"], ww2d, params["b_conv1"], wt_pad, bt_pad)

    return emission[:, :, :N_TAG]                                           # (B, S, N_TAG)


# ----------------------------------------- reference (jnp) --------------------------------------
def ref_forward(params, words_batch, chars_batch):
    b_, s_ = words_batch.shape
    emb_chars = params["emb_char"][chars_batch]
    emb_words = params["emb_word"][words_batch]
    x = emb_chars.reshape(b_ * s_, MAX_LEN_WORD, DIM_EMB_CHAR)
    x = jnp.pad(x, ((0, 0), (PAD_CHAR_T, PAD_CHAR_T), (0, 0)))
    l_out = MAX_LEN_WORD + 2 * PAD_CHAR_T - KH_CHAR + 1
    acc = jnp.zeros((b_ * s_, l_out, C_CHAR)) + params["b_conv_char"]
    for k in range(KH_CHAR):
        acc = acc + jnp.einsum("nle,ec->nlc", x[:, k:k + l_out], params["w_conv_char"][k])
    out_char = jnp.max(acc, axis=1).reshape(b_, s_, C_CHAR)
    emb_wc = jnp.concatenate([emb_words, out_char], axis=-1)
    xw = jnp.pad(emb_wc, ((0, 0), (PAD_WORD_T, PAD_WORD_T), (0, 0)))
    acc2 = jnp.zeros((b_, s_, C_WORD)) + params["b_conv1"]
    for k in range(WINDOW_KERNEL):
        acc2 = acc2 + jnp.einsum("bsd,dc->bsc", xw[:, k:k + s_], params["w_conv1"][k])
    return jnp.einsum("bsc,ct->bst", acc2, params["w_tag"]) + params["b_tag"]


# --------------------------------------------- main ---------------------------------------------
def init_params(key):
    ks = jax.random.split(key, 8)
    emb_char = 0.1 * jax.random.normal(ks[0], (N_CHAR + 1, DIM_EMB_CHAR), jnp.float32)
    emb_char = emb_char.at[IDX_PAD_CHAR].set(0.0)              # padding_idx
    emb_word = 0.1 * jax.random.normal(ks[1], (N_WORD + 1, DIM_EMB_WORD), jnp.float32)
    emb_word = emb_word.at[IDX_PAD_WORD].set(0.0)
    return {
        "emb_char": emb_char,
        "emb_word": emb_word,
        "w_conv_char": 0.1 * jax.random.normal(ks[2], (KH_CHAR, DIM_EMB_CHAR, C_CHAR), jnp.float32),
        "b_conv_char": 0.01 * jax.random.normal(ks[3], (1, C_CHAR), jnp.float32),
        "w_conv1": 0.1 * jax.random.normal(ks[4], (WINDOW_KERNEL, DIM_IN_WORD, C_WORD), jnp.float32),
        "b_conv1": 0.01 * jax.random.normal(ks[5], (1, C_WORD), jnp.float32),
        "w_tag": 0.1 * jax.random.normal(ks[6], (C_WORD, N_TAG), jnp.float32),
        "b_tag": 0.01 * jax.random.normal(ks[7], (1, N_TAG), jnp.float32),
    }


if __name__ == "__main__":
    key = jax.random.PRNGKey(0)
    kp, kw_, kc_ = jax.random.split(key, 3)
    params = init_params(kp)

    words_batch = jax.random.randint(kw_, (BATCH, SEQ), 0, N_WORD + 1, dtype=jnp.int32)
    chars_batch = jax.random.randint(kc_, (BATCH, SEQ, MAX_LEN_WORD), 0, N_CHAR + 1, dtype=jnp.int32)

    fwd = jax.jit(bilstm_crf_forward)
    out = jax.block_until_ready(fwd(params, words_batch, chars_batch))

    ref = ref_forward(params, words_batch, chars_batch)
    assert out.shape == (BATCH, SEQ, N_TAG)
    assert jnp.allclose(out, ref, atol=2e-4, rtol=1e-4), "mismatch vs reference"
    print("KERNEL_OK")
</pallas_src>

<mosaic_0001>
module attributes {stable_mosaic.version = 11 : i64} {
  func.func @fused_emission_kernel(%arg0: i32, %arg1: memref<1x160x1xi32, #tpu.memory_space<vmem>>, %arg2: memref<1x8x1xi32, #tpu.memory_space<vmem>>, %arg3: memref<31x16xf32, #tpu.memory_space<vmem>>, %arg4: memref<51x32xf32, #tpu.memory_space<vmem>>, %arg5: memref<48x32xf32, #tpu.memory_space<vmem>>, %arg6: memref<1x32xf32, #tpu.memory_space<vmem>>, %arg7: memref<192x64xf32, #tpu.memory_space<vmem>>, %arg8: memref<1x64xf32, #tpu.memory_space<vmem>>, %arg9: memref<64x128xf32, #tpu.memory_space<vmem>>, %arg10: memref<1x128xf32, #tpu.memory_space<vmem>>, %arg11: memref<1x8x128xf32, #tpu.memory_space<vmem>>) attributes {dimension_semantics = [#tpu.dimension_semantics<parallel>], iteration_bounds = array<i64: 2>, scalar_prefetch = 0 : i64, scratch_operands = 0 : i64, tpu.core_type = #tpu.core_type<tc>, window_params = [{transform_indices = @transform_0, window_bounds = array<i64: 1, 160, 1>}, {transform_indices = @transform_1, window_bounds = array<i64: 1, 8, 1>}, {pipeline_mode = #tpu.pipeline_mode<synchronous>, transform_indices = @transform_2, window_bounds = array<i64: 31, 16>}, {pipeline_mode = #tpu.pipeline_mode<synchronous>, transform_indices = @transform_3, window_bounds = array<i64: 51, 32>}, {pipeline_mode = #tpu.pipeline_mode<synchronous>, transform_indices = @transform_4, window_bounds = array<i64: 48, 32>}, {pipeline_mode = #tpu.pipeline_mode<synchronous>, transform_indices = @transform_5, window_bounds = array<i64: 1, 32>}, {pipeline_mode = #tpu.pipeline_mode<synchronous>, transform_indices = @transform_6, window_bounds = array<i64: 192, 64>}, {pipeline_mode = #tpu.pipeline_mode<synchronous>, transform_indices = @transform_7, window_bounds = array<i64: 1, 64>}, {pipeline_mode = #tpu.pipeline_mode<synchronous>, transform_indices = @transform_8, window_bounds = array<i64: 64, 128>}, {pipeline_mode = #tpu.pipeline_mode<synchronous>, transform_indices = @transform_9, window_bounds = array<i64: 1, 128>}, {transform_indices = @transform_10, window_bounds = array<i64: 1, 8, 128>}]} {
    %c0 = arith.constant 0 : index
    %c0_0 = arith.constant 0 : index
    %c0_1 = arith.constant 0 : index
    %0 = vector.load %arg1[%c0, %c0_0, %c0_1] : memref<1x160x1xi32, #tpu.memory_space<vmem>>, vector<1x160x1xi32>
    %1 = vector.shape_cast %0 : vector<1x160x1xi32> to vector<160x1xi32>
    %2 = tpu.iota {dimensions = array<i32: 1>} : vector<160x31xi32>
    %3 = vector.broadcast %1 : vector<160x1xi32> to vector<160x31xi32>
    %4 = arith.cmpi eq, %3, %2 : vector<160x31xi32>
    %5 = arith.extui %4 : vector<160x31xi1> to vector<160x31xi32>
    %6 = arith.sitofp %5 : vector<160x31xi32> to vector<160x31xf32>
    %c0_2 = arith.constant 0 : index
    %c0_3 = arith.constant 0 : index
    %7 = vector.load %arg3[%c0_2, %c0_3] : memref<31x16xf32, #tpu.memory_space<vmem>>, vector<31x16xf32>
    %cst = arith.constant dense<0.000000e+00> : vector<160x16xf32>
    %8 = tpu.matmul %6, %7, %cst {dimension_numbers = #tpu.dot_dimension_numbers<[1], [0], [0], [1], [0, 0, 1, 1], [], []>} : vector<160x31xf32>, vector<31x16xf32>, vector<160x16xf32> -> vector<160x16xf32>
    %cst_4 = arith.constant 0.000000e+00 : f32
    %9 = vector.broadcast %cst_4 : f32 to vector<2x16xf32>
    %10 = tpu.concatenate %8, %9 in 0 : vector<160x16xf32>, vector<2x16xf32> -> vector<162x16xf32>
    %11 = vector.extract_strided_slice %10 {offsets = [0, 0], sizes = [160, 16], strides = [1, 1]} : vector<162x16xf32> to vector<160x16xf32>
    %12 = vector.extract_strided_slice %10 {offsets = [1, 0], sizes = [160, 16], strides = [1, 1]} : vector<162x16xf32> to vector<160x16xf32>
    %13 = vector.extract_strided_slice %10 {offsets = [2, 0], sizes = [160, 16], strides = [1, 1]} : vector<162x16xf32> to vector<160x16xf32>
    %14 = tpu.concatenate %11, %12, %13 in 1 : vector<160x16xf32>, vector<160x16xf32>, vector<160x16xf32> -> vector<160x48xf32>
    %c0_5 = arith.constant 0 : index
    %c0_6 = arith.constant 0 : index
    %15 = vector.load %arg5[%c0_5, %c0_6] : memref<48x32xf32, #tpu.memory_space<vmem>>, vector<48x32xf32>
    %cst_7 = arith.constant dense<0.000000e+00> : vector<160x32xf32>
    %16 = tpu.matmul %14, %15, %cst_7 {dimension_numbers = #tpu.dot_dimension_numbers<[1], [0], [0], [1], [0, 0, 1, 1], [], []>} : vector<160x48xf32>, vector<48x32xf32>, vector<160x32xf32> -> vector<160x32xf32>
    %c0_8 = arith.constant 0 : index
    %c0_9 = arith.constant 0 : index
    %17 = vector.load %arg6[%c0_8, %c0_9] : memref<1x32xf32, #tpu.memory_space<vmem>>, vector<1x32xf32>
    %18 = vector.broadcast %17 : vector<1x32xf32> to vector<160x32xf32>
    %19 = arith.addf %16, %18 : vector<160x32xf32>
    %20 = vector.extract_strided_slice %19 {offsets = [0, 0], sizes = [18, 32], strides = [1, 1]} : vector<160x32xf32> to vector<18x32xf32>
    %cst_10 = arith.constant dense<0xFF800000> : vector<32xf32>
    %21 = vector.multi_reduction <maximumf>, %20, %cst_10 [0] : vector<18x32xf32> to vector<32xf32>
    %22 = vector.shape_cast %21 : vector<32xf32> to vector<1x32xf32>
    %23 = vector.extract_strided_slice %19 {offsets = [20, 0], sizes = [18, 32], strides = [1, 1]} : vector<160x32xf32> to vector<18x32xf32>
    %cst_11 = arith.constant dense<0xFF800000> : vector<32xf32>
    %24 = vector.multi_reduction <maximumf>, %23, %cst_11 [0] : vector<18x32xf32> to vector<32xf32>
    %25 = vector.shape_cast %24 : vector<32xf32> to vector<1x32xf32>
    %26 = vector.extract_strided_slice %19 {offsets = [40, 0], sizes = [18, 32], strides = [1, 1]} : vector<160x32xf32> to vector<18x32xf32>
    %cst_12 = arith.constant dense<0xFF800000> : vector<32xf32>
    %27 = vector.multi_reduction <maximumf>, %26, %cst_12 [0] : vector<18x32xf32> to vector<32xf32>
    %28 = vector.shape_cast %27 : vector<32xf32> to vector<1x32xf32>
    %29 = vector.extract_strided_slice %19 {offsets = [60, 0], sizes = [18, 32], strides = [1, 1]} : vector<160x32xf32> to vector<18x32xf32>
    %cst_13 = arith.constant dense<0xFF800000> : vector<32xf32>
    %30 = vector.multi_reduction <maximumf>, %29, %cst_13 [0] : vector<18x32xf32> to vector<32xf32>
    %31 = vector.shape_cast %30 : vector<32xf32> to vector<1x32xf32>
    %32 = vector.extract_strided_slice %19 {offsets = [80, 0], sizes = [18, 32], strides = [1, 1]} : vector<160x32xf32> to vector<18x32xf32>
    %cst_14 = arith.constant dense<0xFF800000> : vector<32xf32>
    %33 = vector.multi_reduction <maximumf>, %32, %cst_14 [0] : vector<18x32xf32> to vector<32xf32>
    %34 = vector.shape_cast %33 : vector<32xf32> to vector<1x32xf32>
    %35 = vector.extract_strided_slice %19 {offsets = [100, 0], sizes = [18, 32], strides = [1, 1]} : vector<160x32xf32> to vector<18x32xf32>
    %cst_15 = arith.constant dense<0xFF800000> : vector<32xf32>
    %36 = vector.multi_reduction <maximumf>, %35, %cst_15 [0] : vector<18x32xf32> to vector<32xf32>
    %37 = vector.shape_cast %36 : vector<32xf32> to vector<1x32xf32>
    %38 = vector.extract_strided_slice %19 {offsets = [120, 0], sizes = [18, 32], strides = [1, 1]} : vector<160x32xf32> to vector<18x32xf32>
    %cst_16 = arith.constant dense<0xFF800000> : vector<32xf32>
    %39 = vector.multi_reduction <maximumf>, %38, %cst_16 [0] : vector<18x32xf32> to vector<32xf32>
    %40 = vector.shape_cast %39 : vector<32xf32> to vector<1x32xf32>
    %41 = vector.extract_strided_slice %19 {offsets = [140, 0], sizes = [18, 32], strides = [1, 1]} : vector<160x32xf32> to vector<18x32xf32>
    %cst_17 = arith.constant dense<0xFF800000> : vector<32xf32>
    %42 = vector.multi_reduction <maximumf>, %41, %cst_17 [0] : vector<18x32xf32> to vector<32xf32>
    %43 = vector.shape_cast %42 : vector<32xf32> to vector<1x32xf32>
    %44 = tpu.concatenate %22, %25, %28, %31, %34, %37, %40, %43 in 0 : vector<1x32xf32>, vector<1x32xf32>, vector<1x32xf32>, vector<1x32xf32>, vector<1x32xf32>, vector<1x32xf32>, vector<1x32xf32>, vector<1x32xf32> -> vector<8x32xf32>
    %c0_18 = arith.constant 0 : index
    %c0_19 = arith.constant 0 : index
    %c0_20 = arith.constant 0 : index
    %45 = vector.load %arg2[%c0_18, %c0_19, %c0_20] : memref<1x8x1xi32, #tpu.memory_space<vmem>>, vector<1x8x1xi32>
    %46 = vector.shape_cast %45 : vector<1x8x1xi32> to vector<8x1xi32>
    %47 = tpu.iota {dimensions = array<i32: 1>} : vector<8x51xi32>
    %48 = vector.broadcast %46 : vector<8x1xi32> to vector<8x51xi32>
    %49 = arith.cmpi eq, %48, %47 : vector<8x51xi32>
    %50 = arith.extui %49 : vector<8x51xi1> to vector<8x51xi32>
    %51 = arith.sitofp %50 : vector<8x51xi32> to vector<8x51xf32>
    %c0_21 = arith.constant 0 : index
    %c0_22 = arith.constant 0 : index
    %52 = vector.load %arg4[%c0_21, %c0_22] : memref<51x32xf32, #tpu.memory_space<vmem>>, vector<51x32xf32>
    %cst_23 = arith.constant dense<0.000000e+00> : vector<8x32xf32>
    %53 = tpu.matmul %51, %52, %cst_23 {dimension_numbers = #tpu.dot_dimension_numbers<[1], [0], [0], [1], [0, 0, 1, 1], [], []>} : vector<8x51xf32>, vector<51x32xf32>, vector<8x32xf32> -> vector<8x32xf32>
    %54 = tpu.concatenate %53, %44 in 1 : vector<8x32xf32>, vector<8x32xf32> -> vector<8x64xf32>
    %cst_24 = arith.constant 0.000000e+00 : f32
    %55 = vector.broadcast %cst_24 : f32 to vector<1x64xf32>
    %56 = tpu.concatenate %55, %54, %55 in 0 : vector<1x64xf32>, vector<8x64xf32>, vector<1x64xf32> -> vector<10x64xf32>
    %57 = vector.extract_strided_slice %56 {offsets = [0, 0], sizes = [8, 64], strides = [1, 1]} : vector<10x64xf32> to vector<8x64xf32>
    %58 = vector.extract_strided_slice %56 {offsets = [1, 0], sizes = [8, 64], strides = [1, 1]} : vector<10x64xf32> to vector<8x64xf32>
    %59 = vector.extract_strided_slice %56 {offsets = [2, 0], sizes = [8, 64], strides = [1, 1]} : vector<10x64xf32> to vector<8x64xf32>
    %60 = tpu.concatenate %57, %58, %59 in 1 : vector<8x64xf32>, vector<8x64xf32>, vector<8x64xf32> -> vector<8x192xf32>
    %c0_25 = arith.constant 0 : index
    %c0_26 = arith.constant 0 : index
    %61 = vector.load %arg7[%c0_25, %c0_26] : memref<192x64xf32, #tpu.memory_space<vmem>>, vector<192x64xf32>
    %cst_27 = arith.constant dense<0.000000e+00> : vector<8x64xf32>
    %62 = tpu.matmul %60, %61, %cst_27 {dimension_numbers = #tpu.dot_dimension_numbers<[1], [0], [0], [1], [0, 0, 1, 1], [], []>} : vector<8x192xf32>, vector<192x64xf32>, vector<8x64xf32> -> vector<8x64xf32>
    %c0_28 = arith.constant 0 : index
    %c0_29 = arith.constant 0 : index
    %63 = vector.load %arg8[%c0_28, %c0_29] : memref<1x64xf32, #tpu.memory_space<vmem>>, vector<1x64xf32>
    %64 = vector.broadcast %63 : vector<1x64xf32> to vector<8x64xf32>
    %65 = arith.addf %62, %64 : vector<8x64xf32>
    %c0_30 = arith.constant 0 : index
    %c0_31 = arith.constant 0 : index
    %66 = vector.load %arg9[%c0_30, %c0_31] : memref<64x128xf32, #tpu.memory_space<vmem>>, vector<64x128xf32>
    %cst_32 = arith.constant dense<0.000000e+00> : vector<8x128xf32>
    %67 = tpu.matmul %65, %66, %cst_32 {dimension_numbers = #tpu.dot_dimension_numbers<[1], [0], [0], [1], [0, 0, 1, 1], [], []>} : vector<8x64xf32>, vector<64x128xf32>, vector<8x128xf32> -> vector<8x128xf32>
    %c0_33 = arith.constant 0 : index
    %c0_34 = arith.constant 0 : index
    %68 = vector.load %arg10[%c0_33, %c0_34] : memref<1x128xf32, #tpu.memory_space<vmem>>, vector<1x128xf32>
    %69 = vector.broadcast %68 : vector<1x128xf32> to vector<8x128xf32>
    %70 = arith.addf %67, %69 : vector<8x128xf32>
    %c0_35 = arith.constant 0 : index
    %c0_36 = arith.constant 0 : index
    %c0_37 = arith.constant 0 : index
    %71 = vector.load %arg11[%c0_35, %c0_36, %c0_37] : memref<1x8x128xf32, #tpu.memory_space<vmem>>, vector<1x8x128xf32>
    %72 = vector.shape_cast %71 : vector<1x8x128xf32> to vector<8x128xf32>
    %73 = vector.shape_cast %70 : vector<8x128xf32> to vector<1x8x128xf32>
    tpu.vector_store %arg11[%c0_35, %c0_36, %c0_37], %73 {strides = array<i32>} : memref<1x8x128xf32, #tpu.memory_space<vmem>>, vector<1x8x128xf32>,
    return
  }
  func.func @transform_0(%arg0: i32) -> (i32, i32, i32) {
    %c0_i32 = arith.constant 0 : i32
    %c0_i32_0 = arith.constant 0 : i32
    %c0_i32_1 = arith.constant 0 : i32
    return %arg0, %c0_i32, %c0_i32_0 : i32, i32, i32
  }
  func.func @transform_1(%arg0: i32) -> (i32, i32, i32) {
    %c0_i32 = arith.constant 0 : i32
    %c0_i32_0 = arith.constant 0 : i32
    %c0_i32_1 = arith.constant 0 : i32
    return %arg0, %c0_i32, %c0_i32_0 : i32, i32, i32
  }
  func.func @transform_2(%arg0: i32) -> (i32, i32) {
    %c0_i32 = arith.constant 0 : i32
    %c0_i32_0 = arith.constant 0 : i32
    %c0_i32_1 = arith.constant 0 : i32
    return %c0_i32, %c0_i32_0 : i32, i32
  }
  func.func @transform_3(%arg0: i32) -> (i32, i32) {
    %c0_i32 = arith.constant 0 : i32
    %c0_i32_0 = arith.constant 0 : i32
    %c0_i32_1 = arith.constant 0 : i32
    return %c0_i32, %c0_i32_0 : i32, i32
  }
  func.func @transform_4(%arg0: i32) -> (i32, i32) {
    %c0_i32 = arith.constant 0 : i32
    %c0_i32_0 = arith.constant 0 : i32
    %c0_i32_1 = arith.constant 0 : i32
    return %c0_i32, %c0_i32_0 : i32, i32
  }
  func.func @transform_5(%arg0: i32) -> (i32, i32) {
    %c0_i32 = arith.constant 0 : i32
    %c0_i32_0 = arith.constant 0 : i32
    %c0_i32_1 = arith.constant 0 : i32
    return %c0_i32, %c0_i32_0 : i32, i32
  }
  func.func @transform_6(%arg0: i32) -> (i32, i32) {
    %c0_i32 = arith.constant 0 : i32
    %c0_i32_0 = arith.constant 0 : i32
    %c0_i32_1 = arith.constant 0 : i32
    return %c0_i32, %c0_i32_0 : i32, i32
  }
  func.func @transform_7(%arg0: i32) -> (i32, i32) {
    %c0_i32 = arith.constant 0 : i32
    %c0_i32_0 = arith.constant 0 : i32
    %c0_i32_1 = arith.constant 0 : i32
    return %c0_i32, %c0_i32_0 : i32, i32
  }
  func.func @transform_8(%arg0: i32) -> (i32, i32) {
    %c0_i32 = arith.constant 0 : i32
    %c0_i32_0 = arith.constant 0 : i32
    %c0_i32_1 = arith.constant 0 : i32
    return %c0_i32, %c0_i32_0 : i32, i32
  }
  func.func @transform_9(%arg0: i32) -> (i32, i32) {
    %c0_i32 = arith.constant 0 : i32
    %c0_i32_0 = arith.constant 0 : i32
    %c0_i32_1 = arith.constant 0 : i32
    return %c0_i32, %c0_i32_0 : i32, i32
  }
  func.func @transform_10(%arg0: i32) -> (i32, i32, i32) {
    %c0_i32 = arith.constant 0 : i32
    %c0_i32_0 = arith.constant 0 : i32
    %c0_i32_1 = arith.constant 0 : i32
    return %arg0, %c0_i32, %c0_i32_0 : i32, i32, i32
  }
}

</mosaic_0001>

<llo_original>
// kernel: bilstm_crf_forward.1
$region0: #{bilstm_crf_forward.1}
  #allocation0 [shape = 'u32[]', space=smem, size = 0x4, offset = 0x4, fixed_abs, tag = 'smem constant byte address 0x4 - core index']
  #allocation1 [shape = 'u32[72,128]{1,0:T(1,128)}', space=vmem, size = 0x9000, scoped, tag = 'internal scratch']
  %s0 = inlined_call_operand.vmem [shape: s32[2,160,1], index: 0, kind: input, shape index: {}]
  %s1 = inlined_call_operand.vmem [shape: s32[2,8,1], index: 1, kind: input, shape index: {}]
  %s2 = inlined_call_operand.vmem [shape: f32[31,16], index: 2, kind: input, shape index: {}]
  %s3 = inlined_call_operand.vmem [shape: f32[51,32], index: 3, kind: input, shape index: {}]
  %s4 = inlined_call_operand.vmem [shape: f32[48,32], index: 4, kind: input, shape index: {}]
  %s5 = inlined_call_operand.vmem [shape: f32[1,32], index: 5, kind: input, shape index: {}]
  %s6 = inlined_call_operand.vmem [shape: f32[192,64], index: 6, kind: input, shape index: {}]
  %s7 = inlined_call_operand.vmem [shape: f32[1,64], index: 7, kind: input, shape index: {}]
  %s8 = inlined_call_operand.vmem [shape: f32[64,128], index: 8, kind: input, shape index: {}]
  %s9 = inlined_call_operand.vmem [shape: f32[1,128], index: 9, kind: input, shape index: {}]
  %s10 = inlined_call_operand.hbm [shape: f32[2,8,128], index: 10, kind: output, shape index: {}]
  %s11 = sld [smem:[#allocation0]]
  $region73: #{bilstm_crf_forward.1} parent=0
    _
  %s13 = ssub.s32 1, %s11
  %s14 = scalar_select 0, %s13, %s11
  $region1: #{bilstm_crf_forward.1} parent=0
    #allocation2 [shape = 'u8[8192]{0}', space=vmem, size = 0x2000, scoped, tag = 'output window, operand 0']
    #allocation3 [shape = 's32[2]{0}', space=sflag, size = 0x8, scoped, tag = 'scoped memory for bilstm_crf_forward.1']
    %15 = vsyncpa [#allocation3], 0
    %s16 = scalar_lea.sflag [#allocation3], 1
    %17 = vsyncpa %s16, 0
    loop: start=0, step=1, limit=4
    $region2: #{bilstm_crf_forward.1} parent=1 // loop_pre_header
      _
    $region3: #{bilstm_crf_forward.1} parent=1 // loop_header
      %s19 = sphi 0, %s23
      %p20 = scmp.ge.s32.totalorder %s19, 4
      %s29 = sphi 0, %s31
      %s32 = sphi 0, %s29
      %s33 = sphi 0, %s32
      %s49 = sphi 0, %s33
      %s55 = sphi 0, %s57
      %s58 = sphi 0, %s55
      %s59 = sphi 0, %s58
      %s75 = sphi 0, %s59
      %s79 = sphi 0, %s79
      %s81 = sphi 0, %s79
      %s82 = sphi 0, %s81
      %s96 = sphi 0, %s82
      %s100 = sphi 0, %s100
      %s102 = sphi 0, %s100
      %s103 = sphi 0, %s102
      %s117 = sphi 0, %s103
      %s121 = sphi 0, %s121
      %s123 = sphi 0, %s121
      %s124 = sphi 0, %s123
      %s138 = sphi 0, %s124
      %s142 = sphi 0, %s142
      %s144 = sphi 0, %s142
      %s145 = sphi 0, %s144
      %s159 = sphi 0, %s145
      %s163 = sphi 0, %s163
      %s165 = sphi 0, %s163
      %s166 = sphi 0, %s165
      %s180 = sphi 0, %s166
      %s184 = sphi 0, %s184
      %s186 = sphi 0, %s184
      %s187 = sphi 0, %s186
      %s201 = sphi 0, %s187
      %s205 = sphi 0, %s205
      %s207 = sphi 0, %s205
      %s208 = sphi 0, %s207
      %s222 = sphi 0, %s208
      %s226 = sphi 0, %s226
      %s228 = sphi 0, %s226
      %s229 = sphi 0, %s228
      %s243 = sphi 0, %s229
      %s249 = sphi 0, %s251
      %s252 = sphi 0, %s249
      %s253 = sphi 0, %s252
      %s269 = sphi 0, %s253
    $region4: #{bilstm_crf_forward.1} parent=1 // loop_header_branch
      %22 = sbr.rel (%p20) target = $region8
    $region5: #{bilstm_crf_forward.1} parent=1 // loop_body
      %s24 = ssub.s32 %s19, 1
      %s25 = ssub.s32 %s19, 2
      %s26 = sadd.s32 %s19, 1
      %s27 = ssub.s32 %s19, %s26
      %p28 = scmp.eq.s32.totalorder %s27, 0
      %s30 = sadd.s32 %s29, 1
      %s31 = scalar_select %p28, %s29, %s30
      %p34 = pneg %p28
      %p35 = scmp.eq.s32.totalorder %s19, 1
      %p36 = por %p34, %p35
      %p37 = scmp.ne.s32.totalorder %s29, %s32
      %p38 = scmp.eq.s32.totalorder %s19, 0
      %p39 = por %p37, %p38
      %p40 = scmp.ne.s32.totalorder %s29, %s32
      %p41 = scmp.eq.s32.totalorder %s24, 1
      %p42 = por %p40, %p41
      %p43 = scmp.ne.s32.totalorder %s32, %s33
      %p44 = scmp.eq.s32.totalorder %s24, 0
      %p45 = por %p43, %p44
      %p46 = scmp.ne.s32.totalorder %s32, %s33
      %p47 = scmp.eq.s32.totalorder %s25, 1
      %p48 = por %p46, %p47
      %p50 = scmp.ne.s32.totalorder %s33, %s49
      %p51 = scmp.eq.s32.totalorder %s25, 0
      %p52 = por %p50, %p51
      %s53 = ssub.s32 %s19, %s26
      %p54 = scmp.eq.s32.totalorder %s53, 0
      %s56 = sadd.s32 %s55, 1
      %s57 = scalar_select %p54, %s55, %s56
      %p60 = pneg %p54
      %p61 = scmp.eq.s32.totalorder %s19, 1
      %p62 = por %p60, %p61
      %p63 = scmp.ne.s32.totalorder %s55, %s58
      %p64 = scmp.eq.s32.totalorder %s19, 0
      %p65 = por %p63, %p64
      %p66 = scmp.ne.s32.totalorder %s55, %s58
      %p67 = scmp.eq.s32.totalorder %s24, 1
      %p68 = por %p66, %p67
      %p69 = scmp.ne.s32.totalorder %s58, %s59
      %p70 = scmp.eq.s32.totalorder %s24, 0
      %p71 = por %p69, %p70
      %p72 = scmp.ne.s32.totalorder %s58, %s59
      %p73 = scmp.eq.s32.totalorder %s25, 1
      %p74 = por %p72, %p73
      %p76 = scmp.ne.s32.totalorder %s59, %s75
      %p77 = scmp.eq.s32.totalorder %s25, 0
      %p78 = por %p76, %p77
      %s80 = sadd.s32 %s79, 1
      %p83 = scmp.eq.s32.totalorder %s19, 1
      %p84 = scmp.ne.s32.totalorder %s79, %s81
      %p85 = scmp.eq.s32.totalorder %s19, 0
      %p86 = por %p84, %p85
      %p87 = scmp.ne.s32.totalorder %s79, %s81
      %p88 = scmp.eq.s32.totalorder %s24, 1
      %p89 = por %p87, %p88
      %p90 = scmp.ne.s32.totalorder %s81, %s82
      %p91 = scmp.eq.s32.totalorder %s24, 0
      %p92 = por %p90, %p91
      %p93 = scmp.ne.s32.totalorder %s81, %s82
      %p94 = scmp.eq.s32.totalorder %s25, 1
      %p95 = por %p93, %p94
      %p97 = scmp.ne.s32.totalorder %s82, %s96
      %p98 = scmp.eq.s32.totalorder %s25, 0
      %p99 = por %p97, %p98
      %s101 = sadd.s32 %s100, 1
      %p104 = scmp.eq.s32.totalorder %s19, 1
      %p105 = scmp.ne.s32.totalorder %s100, %s102
      %p106 = scmp.eq.s32.totalorder %s19, 0
      %p107 = por %p105, %p106
      %p108 = scmp.ne.s32.totalorder %s100, %s102
      %p109 = scmp.eq.s32.totalorder %s24, 1
      %p110 = por %p108, %p109
      %p111 = scmp.ne.s32.totalorder %s102, %s103
      %p112 = scmp.eq.s32.totalorder %s24, 0
      %p113 = por %p111, %p112
      %p114 = scmp.ne.s32.totalorder %s102, %s103
      %p115 = scmp.eq.s32.totalorder %s25, 1
      %p116 = por %p114, %p115
      %p118 = scmp.ne.s32.totalorder %s103, %s117
      %p119 = scmp.eq.s32.totalorder %s25, 0
      %p120 = por %p118, %p119
      %s122 = sadd.s32 %s121, 1
      %p125 = scmp.eq.s32.totalorder %s19, 1
      %p126 = scmp.ne.s32.totalorder %s121, %s123
      %p127 = scmp.eq.s32.totalorder %s19, 0
      %p128 = por %p126, %p127
      %p129 = scmp.ne.s32.totalorder %s121, %s123
      %p130 = scmp.eq.s32.totalorder %s24, 1
      %p131 = por %p129, %p130
      %p132 = scmp.ne.s32.totalorder %s123, %s124
      %p133 = scmp.eq.s32.totalorder %s24, 0
      %p134 = por %p132, %p133
      %p135 = scmp.ne.s32.totalorder %s123, %s124
      %p136 = scmp.eq.s32.totalorder %s25, 1
      %p137 = por %p135, %p136
      %p139 = scmp.ne.s32.totalorder %s124, %s138
      %p140 = scmp.eq.s32.totalorder %s25, 0
      %p141 = por %p139, %p140
      %s143 = sadd.s32 %s142, 1
      %p146 = scmp.eq.s32.totalorder %s19, 1
      %p147 = scmp.ne.s32.totalorder %s142, %s144
      %p148 = scmp.eq.s32.totalorder %s19, 0
      %p149 = por %p147, %p148
      %p150 = scmp.ne.s32.totalorder %s142, %s144
      %p151 = scmp.eq.s32.totalorder %s24, 1
      %p152 = por %p150, %p151
      %p153 = scmp.ne.s32.totalorder %s144, %s145
      %p154 = scmp.eq.s32.totalorder %s24, 0
      %p155 = por %p153, %p154
      %p156 = scmp.ne.s32.totalorder %s144, %s145
      %p157 = scmp.eq.s32.totalorder %s25, 1
      %p158 = por %p156, %p157
      %p160 = scmp.ne.s32.totalorder %s145, %s159
      %p161 = scmp.eq.s32.totalorder %s25, 0
      %p162 = por %p160, %p161
      %s164 = sadd.s32 %s163, 1
      %p167 = scmp.eq.s32.totalorder %s19, 1
      %p168 = scmp.ne.s32.totalorder %s163, %s165
      %p169 = scmp.eq.s32.totalorder %s19, 0
      %p170 = por %p168, %p169
      %p171 = scmp.ne.s32.totalorder %s163, %s165
      %p172 = scmp.eq.s32.totalorder %s24, 1
      %p173 = por %p171, %p172
      %p174 = scmp.ne.s32.totalorder %s165, %s166
      %p175 = scmp.eq.s32.totalorder %s24, 0
      %p176 = por %p174, %p175
      %p177 = scmp.ne.s32.totalorder %s165, %s166
      %p178 = scmp.eq.s32.totalorder %s25, 1
      %p179 = por %p177, %p178
      %p181 = scmp.ne.s32.totalorder %s166, %s180
      %p182 = scmp.eq.s32.totalorder %s25, 0
      %p183 = por %p181, %p182
      %s185 = sadd.s32 %s184, 1
      %p188 = scmp.eq.s32.totalorder %s19, 1
      %p189 = scmp.ne.s32.totalorder %s184, %s186
      %p190 = scmp.eq.s32.totalorder %s19, 0
      %p191 = por %p189, %p190
      %p192 = scmp.ne.s32.totalorder %s184, %s186
      %p193 = scmp.eq.s32.totalorder %s24, 1
      %p194 = por %p192, %p193
      %p195 = scmp.ne.s32.totalorder %s186, %s187
      %p196 = scmp.eq.s32.totalorder %s24, 0
      %p197 = por %p195, %p196
      %p198 = scmp.ne.s32.totalorder %s186, %s187
      %p199 = scmp.eq.s32.totalorder %s25, 1
      %p200 = por %p198, %p199
      %p202 = scmp.ne.s32.totalorder %s187, %s201
      %p203 = scmp.eq.s32.totalorder %s25, 0
      %p204 = por %p202, %p203
      %s206 = sadd.s32 %s205, 1
      %p209 = scmp.eq.s32.totalorder %s19, 1
      %p210 = scmp.ne.s32.totalorder %s205, %s207
      %p211 = scmp.eq.s32.totalorder %s19, 0
      %p212 = por %p210, %p211
      %p213 = scmp.ne.s32.totalorder %s205, %s207
      %p214 = scmp.eq.s32.totalorder %s24, 1
      %p215 = por %p213, %p214
      %p216 = scmp.ne.s32.totalorder %s207, %s208
      %p217 = scmp.eq.s32.totalorder %s24, 0
      %p218 = por %p216, %p217
      %p219 = scmp.ne.s32.totalorder %s207, %s208
      %p220 = scmp.eq.s32.totalorder %s25, 1
      %p221 = por %p219, %p220
      %p223 = scmp.ne.s32.totalorder %s208, %s222
      %p224 = scmp.eq.s32.totalorder %s25, 0
      %p225 = por %p223, %p224
      %s227 = sadd.s32 %s226, 1
      %p230 = scmp.eq.s32.totalorder %s19, 1
      %p231 = scmp.ne.s32.totalorder %s226, %s228
      %p232 = scmp.eq.s32.totalorder %s19, 0
      %p233 = por %p231, %p232
      %p234 = scmp.ne.s32.totalorder %s226, %s228
      %p235 = scmp.eq.s32.totalorder %s24, 1
      %p236 = por %p234, %p235
      %p237 = scmp.ne.s32.totalorder %s228, %s229
      %p238 = scmp.eq.s32.totalorder %s24, 0
      %p239 = por %p237, %p238
      %p240 = scmp.ne.s32.totalorder %s228, %s229
      %p241 = scmp.eq.s32.totalorder %s25, 1
      %p242 = por %p240, %p241
      %p244 = scmp.ne.s32.totalorder %s229, %s243
      %p245 = scmp.eq.s32.totalorder %s25, 0
      %p246 = por %p244, %p245
      %s247 = ssub.s32 %s19, %s26
      %p248 = scmp.eq.s32.totalorder %s247, 0
      %s250 = sadd.s32 %s249, 1
      %s251 = scalar_select %p248, %s249, %s250
      %p254 = pneg %p248
      %p255 = scmp.eq.s32.totalorder %s19, 1
      %p256 = por %p254, %p255
      %p257 = scmp.ne.s32.totalorder %s249, %s252
      %p258 = scmp.eq.s32.totalorder %s19, 0
      %p259 = por %p257, %p258
      %p260 = scmp.ne.s32.totalorder %s249, %s252
      %p261 = scmp.eq.s32.totalorder %s24, 1
      %p262 = por %p260, %p261
      %p263 = scmp.ne.s32.totalorder %s252, %s253
      %p264 = scmp.eq.s32.totalorder %s24, 0
      %p265 = por %p263, %p264
      %p266 = scmp.ne.s32.totalorder %s252, %s253
      %p267 = scmp.eq.s32.totalorder %s25, 1
      %p268 = por %p266, %p267
      %p270 = scmp.ne.s32.totalorder %s253, %s269
      %p271 = scmp.eq.s32.totalorder %s25, 0
      %p272 = por %p270, %p271
      %p273 = scmp.le.s32.totalorder 1, %s19
      %p274 = scmp.lt.s32.totalorder %s19, 3
      %p275 = pnand %p273, %p274
      %p276 = pneg %p275
      // Predicated region
      $region9: #{bilstm_crf_forward.1} parent=5 // pred_check
        _
      $region10: #{bilstm_crf_forward.1} parent=5 // pred_check_branch
        %278 = sbr.rel (%p275) target = $region12
      $region11: #{bilstm_crf_forward.1} parent=5 // pred_region
        %s279 = ssub.s32 %s19, 1
        // Predicated region
        $region13: #{bilstm_crf_forward.1} parent=11 // pred_check
          %p280 = pneg %p92
        $region14: #{bilstm_crf_forward.1} parent=11 // pred_check_branch
          %282 = sbr.rel (%p280) target = $region16
        $region15: #{bilstm_crf_forward.1} parent=11 // pred_region
          _
        $region16: #{bilstm_crf_forward.1} parent=11 // pred_fallthru
          _
        // Predicated region
        $region17: #{bilstm_crf_forward.1} parent=11 // pred_check
          %p283 = pneg %p113
        $region18: #{bilstm_crf_forward.1} parent=11 // pred_check_branch
          %285 = sbr.rel (%p283) target = $region20
        $region19: #{bilstm_crf_forward.1} parent=11 // pred_region
          _
        $region20: #{bilstm_crf_forward.1} parent=11 // pred_fallthru
          _
        // Predicated region
        $region21: #{bilstm_crf_forward.1} parent=11 // pred_check
          %p286 = pneg %p134
        $region22: #{bilstm_crf_forward.1} parent=11 // pred_check_branch
          %288 = sbr.rel (%p286) target = $region24
        $region23: #{bilstm_crf_forward.1} parent=11 // pred_region
          _
        $region24: #{bilstm_crf_forward.1} parent=11 // pred_fallthru
          _
        // Predicated region
        $region25: #{bilstm_crf_forward.1} parent=11 // pred_check
          %p289 = pneg %p155
        $region26: #{bilstm_crf_forward.1} parent=11 // pred_check_branch
          %291 = sbr.rel (%p289) target = $region28
        $region27: #{bilstm_crf_forward.1} parent=11 // pred_region
          _
        $region28: #{bilstm_crf_forward.1} parent=11 // pred_fallthru
          _
        // Predicated region
        $region29: #{bilstm_crf_forward.1} parent=11 // pred_check
          %p292 = pneg %p176
        $region30: #{bilstm_crf_forward.1} parent=11 // pred_check_branch
          %294 = sbr.rel (%p292) target = $region32
        $region31: #{bilstm_crf_forward.1} parent=11 // pred_region
          _
        $region32: #{bilstm_crf_forward.1} parent=11 // pred_fallthru
          _
        // Predicated region
        $region33: #{bilstm_crf_forward.1} parent=11 // pred_check
          %p295 = pneg %p197
        $region34: #{bilstm_crf_forward.1} parent=11 // pred_check_branch
          %297 = sbr.rel (%p295) target = $region36
        $region35: #{bilstm_crf_forward.1} parent=11 // pred_region
          _
        $region36: #{bilstm_crf_forward.1} parent=11 // pred_fallthru
          _
        // Predicated region
        $region37: #{bilstm_crf_forward.1} parent=11 // pred_check
          %p298 = pneg %p218
        $region38: #{bilstm_crf_forward.1} parent=11 // pred_check_branch
          %300 = sbr.rel (%p298) target = $region40
        $region39: #{bilstm_crf_forward.1} parent=11 // pred_region
          _
        $region40: #{bilstm_crf_forward.1} parent=11 // pred_fallthru
          _
        // Predicated region
        $region41: #{bilstm_crf_forward.1} parent=11 // pred_check
          %p301 = pneg %p239
        $region42: #{bilstm_crf_forward.1} parent=11 // pred_check_branch
          %303 = sbr.rel (%p301) target = $region44
        $region43: #{bilstm_crf_forward.1} parent=11 // pred_region
          _
        $region44: #{bilstm_crf_forward.1} parent=11 // pred_fallthru
          _
      $region12: #{bilstm_crf_forward.1} parent=5 // pred_fallthru
        _
      %p304 = scmp.lt.s32.totalorder %s19, 2
      // Predicated region
      $region45: #{bilstm_crf_forward.1} parent=5 // pred_check
        %p305 = pneg %p304
      $region46: #{bilstm_crf_forward.1} parent=5 // pred_check_branch
        %307 = sbr.rel (%p305) target = $region48
      $region47: #{bilstm_crf_forward.1} parent=5 // pred_region
        // Predicated region
        $region49: #{bilstm_crf_forward.1} parent=47 // pred_check
          %p308 = pneg %p39
        $region50: #{bilstm_crf_forward.1} parent=47 // pred_check_branch
          %310 = sbr.rel (%p308) target = $region52
        $region51: #{bilstm_crf_forward.1} parent=47 // pred_region
          %p311 = scmp.lt.s32.totalorder %s19, 1
          %s312 = scalar_select %p311, %s19, 1
          %s313 = smul.addr %s312, 20
          %s314 = smul.addr %s313, 8
          %s315 = scalar_lea.vmem %s0, %s314
        $region52: #{bilstm_crf_forward.1} parent=47 // pred_fallthru
          _
        // Predicated region
        $region53: #{bilstm_crf_forward.1} parent=47 // pred_check
          %p316 = pneg %p65
        $region54: #{bilstm_crf_forward.1} parent=47 // pred_check_branch
          %318 = sbr.rel (%p316) target = $region56
        $region55: #{bilstm_crf_forward.1} parent=47 // pred_region
          %p319 = scmp.lt.s32.totalorder %s19, 1
          %s320 = scalar_select %p319, %s19, 1
          %s321 = smul.addr %s320, 8
          %s322 = scalar_lea.vmem %s1, %s321
        $region56: #{bilstm_crf_forward.1} parent=47 // pred_fallthru
          _
      $region48: #{bilstm_crf_forward.1} parent=5 // pred_fallthru
        _
      %p323 = scmp.le.s32.totalorder 1, %s19
      %p324 = scmp.lt.s32.totalorder %s19, 3
      %p325 = pnand %p323, %p324
      %p326 = pneg %p325
      // Predicated region
      $region57: #{bilstm_crf_forward.1} parent=5 // pred_check
        _
      $region58: #{bilstm_crf_forward.1} parent=5 // pred_check_branch
        %328 = sbr.rel (%p325) target = $region60
      $region59: #{bilstm_crf_forward.1} parent=5 // pred_region
        %s329 = ssub.s32 %s19, 1
        %p330 = scmp.lt.s32.totalorder %s24, 1
        %s331 = scalar_select %p330, %s24, 1
        %s332 = smul.addr %s331, 20
        %s333 = smul.addr %s332, 8
        %s334 = scalar_lea.vmem %s0, %s333
        %p335 = pneg %p45
        %p336 = pneg %p42
        %p337 = scmp.lt.s32.totalorder %s24, 1
        %s338 = scalar_select %p337, %s24, 1
        %s339 = smul.addr %s338, 8
        %s340 = scalar_lea.vmem %s1, %s339
        %p341 = pneg %p71
        %p342 = pneg %p68
        %p343 = pneg %p92
        %p344 = pneg %p89
        %p345 = pneg %p113
        %p346 = pneg %p110
        %p347 = pneg %p134
        %p348 = pneg %p131
        %p349 = pneg %p155
        %p350 = pneg %p152
        %p351 = pneg %p176
        %p352 = pneg %p173
        %p353 = pneg %p197
        %p354 = pneg %p194
        %p355 = pneg %p218
        %p356 = pneg %p215
        %p357 = pneg %p239
        %p358 = pneg %p236
        %p359 = pneg %p265
        %p360 = pneg %p262
        %s361 = sand.u32 %s252, 1
        %s362 = scalar_lea.sflag [#allocation3], %s361
        %s363 = sand.u32 %s252, 1
        %s364 = smul.addr %s363, 8
        %s365 = scalar_lea.vmem [#allocation2], %s364
        %p366 = scmp.lt.s32.totalorder %s24, 1
        %s367 = scalar_select %p366, %s24, 1
        %s368 = smul.addr %s367, 20
        %s369 = smul.addr %s368, 8
        %s370 = scalar_lea.vmem %s0, %s369
        %p371 = scmp.lt.s32.totalorder %s24, 1
        %s372 = scalar_select %p371, %s24, 1
        %s373 = smul.addr %s372, 8
        %s374 = scalar_lea.vmem %s1, %s373
        %v375 = vld [vmem:[%s370] sm:$0xff]
        %v376 = vld [vmem:[%s370 + $0x8] sm:$0xff]
        %v377 = vld [vmem:[%s370 + $0x10] sm:$0xff]
        %v378 = vld [vmem:[%s370 + $0x18] sm:$0xff]
        %v379 = vld [vmem:[%s370 + $0x20] sm:$0xff]
        %v380 = vld [vmem:[%s370 + $0x28] sm:$0xff]
        %v381 = vld [vmem:[%s370 + $0x30] sm:$0xff]
        %v382 = vld [vmem:[%s370 + $0x38] sm:$0xff]
        %v383 = vld [vmem:[%s370 + $0x40] sm:$0xff]
        %v384 = vld [vmem:[%s370 + $0x48] sm:$0xff]
        %v385 = vld [vmem:[%s370 + $0x50] sm:$0xff]
        %v386 = vld [vmem:[%s370 + $0x58] sm:$0xff]
        %v387 = vld [vmem:[%s370 + $0x60] sm:$0xff]
        %v388 = vld [vmem:[%s370 + $0x68] sm:$0xff]
        %v389 = vld [vmem:[%s370 + $0x70] sm:$0xff]
        %v390 = vld [vmem:[%s370 + $0x78] sm:$0xff]
        %v391 = vld [vmem:[%s370 + $0x80] sm:$0xff]
        %v392 = vld [vmem:[%s370 + $0x88] sm:$0xff]
        %v393 = vld [vmem:[%s370 + $0x90] sm:$0xff]
        %v394 = vld [vmem:[%s370 + $0x98] sm:$0xff]
        %v395 = vlaneseq
        %v396 = vand.u32 %v395, 127
        %397 = vset.pattern.permute.xlu0 0
        %398 = vperm.xlu0 %397, %v375
        %v399 = vpop.permute.xlu0 %398
        %400 = vset.pattern.permute.xlu0 0
        %401 = vperm.xlu0 %400, %v376
        %v402 = vpop.permute.xlu0 %401
        %403 = vset.pattern.permute.xlu0 0
        %404 = vperm.xlu0 %403, %v377
        %v405 = vpop.permute.xlu0 %404
        %406 = vset.pattern.permute.xlu0 0
        %407 = vperm.xlu0 %406, %v378
        %v408 = vpop.permute.xlu0 %407
        %409 = vset.pattern.permute.xlu0 0
        %410 = vperm.xlu0 %409, %v379
        %v411 = vpop.permute.xlu0 %410
        %412 = vset.pattern.permute.xlu0 0
        %413 = vperm.xlu0 %412, %v380
        %v414 = vpop.permute.xlu0 %413
        %415 = vset.pattern.permute.xlu0 0
        %416 = vperm.xlu0 %415, %v381
        %v417 = vpop.permute.xlu0 %416
        %418 = vset.pattern.permute.xlu0 0
        %419 = vperm.xlu0 %418, %v382
        %v420 = vpop.permute.xlu0 %419
        %421 = vset.pattern.permute.xlu0 0
        %422 = vperm.xlu0 %421, %v383
        %v423 = vpop.permute.xlu0 %422
        %424 = vset.pattern.permute.xlu0 0
        %425 = vperm.xlu0 %424, %v384
        %v426 = vpop.permute.xlu0 %425
        %427 = vset.pattern.permute.xlu0 0
        %428 = vperm.xlu0 %427, %v385
        %v429 = vpop.permute.xlu0 %428
        %430 = vset.pattern.permute.xlu0 0
        %431 = vperm.xlu0 %430, %v386
        %v432 = vpop.permute.xlu0 %431
        %433 = vset.pattern.permute.xlu0 0
        %434 = vperm.xlu0 %433, %v387
        %v435 = vpop.permute.xlu0 %434
        %436 = vset.pattern.permute.xlu0 0
        %437 = vperm.xlu0 %436, %v388
        %v438 = vpop.permute.xlu0 %437
        %439 = vset.pattern.permute.xlu0 0
        %440 = vperm.xlu0 %439, %v389
        %v441 = vpop.permute.xlu0 %440
        %442 = vset.pattern.permute.xlu0 0
        %443 = vperm.xlu0 %442, %v390
        %v444 = vpop.permute.xlu0 %443
        %445 = vset.pattern.permute.xlu0 0
        %446 = vperm.xlu0 %445, %v391
        %v447 = vpop.permute.xlu0 %446
        %448 = vset.pattern.permute.xlu0 0
        %449 = vperm.xlu0 %448, %v392
        %v450 = vpop.permute.xlu0 %449
        %451 = vset.pattern.permute.xlu0 0
        %452 = vperm.xlu0 %451, %v393
        %v453 = vpop.permute.xlu0 %452
        %454 = vset.pattern.permute.xlu0 0
        %455 = vperm.xlu0 %454, %v394
        %v456 = vpop.permute.xlu0 %455
        %vm457 = vcmp.eq.s32.totalorder %v399, %v396
        %vm458 = vcmp.eq.s32.totalorder %v402, %v396
        %vm459 = vcmp.eq.s32.totalorder %v405, %v396
        %vm460 = vcmp.eq.s32.totalorder %v408, %v396
        %vm461 = vcmp.eq.s32.totalorder %v411, %v396
        %vm462 = vcmp.eq.s32.totalorder %v414, %v396
        %vm463 = vcmp.eq.s32.totalorder %v417, %v396
        %vm464 = vcmp.eq.s32.totalorder %v420, %v396
        %vm465 = vcmp.eq.s32.totalorder %v423, %v396
        %vm466 = vcmp.eq.s32.totalorder %v426, %v396
        %vm467 = vcmp.eq.s32.totalorder %v429, %v396
        %vm468 = vcmp.eq.s32.totalorder %v432, %v396
        %vm469 = vcmp.eq.s32.totalorder %v435, %v396
        %vm470 = vcmp.eq.s32.totalorder %v438, %v396
        %vm471 = vcmp.eq.s32.totalorder %v441, %v396
        %vm472 = vcmp.eq.s32.totalorder %v444, %v396
        %vm473 = vcmp.eq.s32.totalorder %v447, %v396
        %vm474 = vcmp.eq.s32.totalorder %v450, %v396
        %vm475 = vcmp.eq.s32.totalorder %v453, %v396
        %vm476 = vcmp.eq.s32.totalorder %v456, %v396
        %v477 = vsel %vm457, 1, 0
        %v478 = vsel %vm458, 1, 0
        %v479 = vsel %vm459, 1, 0
        %v480 = vsel %vm460, 1, 0
        %v481 = vsel %vm461, 1, 0
        %v482 = vsel %vm462, 1, 0
        %v483 = vsel %vm463, 1, 0
        %v484 = vsel %vm464, 1, 0
        %v485 = vsel %vm465, 1, 0
        %v486 = vsel %vm466, 1, 0
        %v487 = vsel %vm467, 1, 0
        %v488 = vsel %vm468, 1, 0
        %v489 = vsel %vm469, 1, 0
        %v490 = vsel %vm470, 1, 0
        %v491 = vsel %vm471, 1, 0
        %v492 = vsel %vm472, 1, 0
        %v493 = vsel %vm473, 1, 0
        %v494 = vsel %vm474, 1, 0
        %v495 = vsel %vm475, 1, 0
        %v496 = vsel %vm476, 1, 0
        %v497 = vcvt.s32.f32 %v477
        %v498 = vcvt.s32.f32 %v478
        %v499 = vcvt.s32.f32 %v479
        %v500 = vcvt.s32.f32 %v480
        %v501 = vcvt.s32.f32 %v481
        %v502 = vcvt.s32.f32 %v482
        %v503 = vcvt.s32.f32 %v483
        %v504 = vcvt.s32.f32 %v484
        %v505 = vcvt.s32.f32 %v485
        %v506 = vcvt.s32.f32 %v486
        %v507 = vcvt.s32.f32 %v487
        %v508 = vcvt.s32.f32 %v488
        %v509 = vcvt.s32.f32 %v489
        %v510 = vcvt.s32.f32 %v490
        %v511 = vcvt.s32.f32 %v491
        %v512 = vcvt.s32.f32 %v492
        %v513 = vcvt.s32.f32 %v493
        %v514 = vcvt.s32.f32 %v494
        %v515 = vcvt.s32.f32 %v495
        %v516 = vcvt.s32.f32 %v496
        %v517 = vld [vmem:[%s2] sm:$0xff]
        %v518 = vld [vmem:[%s2 + $0x8] sm:$0xff]
        %v519 = vld [vmem:[%s2 + $0x10] sm:$0xff]
        %v520 = vld [vmem:[%s2 + $0x18] sm:$0x7f]
        %vm521 = vcmask 252928
        %v523 = vsel %vm521, %v497, 0
        %v526 = vsel %vm521, %v498, 0
        %v529 = vsel %vm521, %v499, 0
        %v532 = vsel %vm521, %v500, 0
        %v535 = vsel %vm521, %v501, 0
        %v538 = vsel %vm521, %v502, 0
        %v541 = vsel %vm521, %v503, 0
        %v544 = vsel %vm521, %v504, 0
        %v547 = vsel %vm521, %v505, 0
        %v550 = vsel %vm521, %v506, 0
        %v553 = vsel %vm521, %v507, 0
        %v556 = vsel %vm521, %v508, 0
        %v559 = vsel %vm521, %v509, 0
        %v562 = vsel %vm521, %v510, 0
        %v565 = vsel %vm521, %v511, 0
        %v568 = vsel %vm521, %v512, 0
        %v571 = vsel %vm521, %v513, 0
        %v574 = vsel %vm521, %v514, 0
        %v577 = vsel %vm521, %v515, 0
        %v580 = vsel %vm521, %v516, 0
        %vm582 = vcmask 1046528
        %v584 = vsel %vm582, %v520, 0
        %586 = vmatpush.msra.mxu0 0.0
        %587 = vmatpush.msra.mxu0 0.0
        %588 = vmatpush.msra.mxu0 0.0
        %589 = vmatpush.msra.mxu0 0.0
        %590 = vmatpush.msra.mxu0 0.0
        %591 = vmatpush.msra.mxu0 0.0
        %592 = vmatpush.msra.mxu0 0.0
        %593 = vmatpush.msra.mxu0 0.0
        %594 = vmatpush.msra.mxu0 0.0
        %595 = vmatpush.msra.mxu0 0.0
        %596 = vmatpush.msra.mxu0 0.0
        %597 = vmatpush.msra.mxu0 0.0
        %598 = vmatpush.msra.mxu0 %v584
        %599 = vmatpush.msra.mxu0 %v519
        %600 = vmatpush.msra.mxu0 %v518
        %601 = vmatpush.msra.mxu0 %v517
        %602 = vmatmul.f32.gmra.mxu0 %v523
        %v603 = vpop.f32.mrf.mxu0
        %v604 = vadd.f32 0.0, %v603
        %605 = vmatmul.f32.gmra.mxu0 %v526
        %v606 = vpop.f32.mrf.mxu0
        %v607 = vadd.f32 0.0, %v606
        %608 = vmatmul.f32.gmra.mxu0 %v529
        %v609 = vpop.f32.mrf.mxu0
        %v610 = vadd.f32 0.0, %v609
        %611 = vmatmul.f32.gmra.mxu0 %v532
        %v612 = vpop.f32.mrf.mxu0
        %v613 = vadd.f32 0.0, %v612
        %614 = vmatmul.f32.gmra.mxu0 %v535
        %v615 = vpop.f32.mrf.mxu0
        %v616 = vadd.f32 0.0, %v615
        %617 = vmatmul.f32.gmra.mxu0 %v538
        %v618 = vpop.f32.mrf.mxu0
        %v619 = vadd.f32 0.0, %v618
        %620 = vmatmul.f32.gmra.mxu0 %v541
        %v621 = vpop.f32.mrf.mxu0
        %v622 = vadd.f32 0.0, %v621
        %623 = vmatmul.f32.gmra.mxu0 %v544
        %v624 = vpop.f32.mrf.mxu0
        %v625 = vadd.f32 0.0, %v624
        %626 = vmatmul.f32.gmra.mxu0 %v547
        %v627 = vpop.f32.mrf.mxu0
        %v628 = vadd.f32 0.0, %v627
        %629 = vmatmul.f32.gmra.mxu0 %v550
        %v630 = vpop.f32.mrf.mxu0
        %v631 = vadd.f32 0.0, %v630
        %632 = vmatmul.f32.gmra.mxu0 %v553
        %v633 = vpop.f32.mrf.mxu0
        %v634 = vadd.f32 0.0, %v633
        %635 = vmatmul.f32.gmra.mxu0 %v556
        %v636 = vpop.f32.mrf.mxu0
        %v637 = vadd.f32 0.0, %v636
        %638 = vmatmul.f32.gmra.mxu0 %v559
        %v639 = vpop.f32.mrf.mxu0
        %v640 = vadd.f32 0.0, %v639
        %641 = vmatmul.f32.gmra.mxu0 %v562
        %v642 = vpop.f32.mrf.mxu0
        %v643 = vadd.f32 0.0, %v642
        %644 = vmatmul.f32.gmra.mxu0 %v565
        %v645 = vpop.f32.mrf.mxu0
        %v646 = vadd.f32 0.0, %v645
        %647 = vmatmul.f32.gmra.mxu0 %v568
        %v648 = vpop.f32.mrf.mxu0
        %v649 = vadd.f32 0.0, %v648
        %650 = vmatmul.f32.gmra.mxu0 %v571
        %v651 = vpop.f32.mrf.mxu0
        %v652 = vadd.f32 0.0, %v651
        %653 = vmatmul.f32.gmra.mxu0 %v574
        %v654 = vpop.f32.mrf.mxu0
        %v655 = vadd.f32 0.0, %v654
        %656 = vmatmul.f32.gmra.mxu0 %v577
        %v657 = vpop.f32.mrf.mxu0
        %v658 = vadd.f32 0.0, %v657
        %659 = vmatmul.f32.gmra.mxu0 %v580
        %v660 = vpop.f32.mrf.mxu0
        %v661 = vadd.f32 0.0, %v660
        %662 = vdwg.mxu0
        %v684 = vrot.slane %v604, 1
        %v685 = vrot.slane %v607, 1
        %v686 = vsel %vm582, %v684, %v685
        %v687 = vrot.slane %v610, 1
        %v688 = vsel %vm582, %v685, %v687
        %v689 = vrot.slane %v613, 1
        %v690 = vsel %vm582, %v687, %v689
        %v691 = vrot.slane %v616, 1
        %v692 = vsel %vm582, %v689, %v691
        %v693 = vrot.slane %v619, 1
        %v694 = vsel %vm582, %v691, %v693
        %v695 = vrot.slane %v622, 1
        %v696 = vsel %vm582, %v693, %v695
        %v697 = vrot.slane %v625, 1
        %v698 = vsel %vm582, %v695, %v697
        %v699 = vrot.slane %v628, 1
        %v700 = vsel %vm582, %v697, %v699
        %v701 = vrot.slane %v631, 1
        %v702 = vsel %vm582, %v699, %v701
        %v703 = vrot.slane %v634, 1
        %v704 = vsel %vm582, %v701, %v703
        %v705 = vrot.slane %v637, 1
        %v706 = vsel %vm582, %v703, %v705
        %v707 = vrot.slane %v640, 1
        %v708 = vsel %vm582, %v705, %v707
        %v709 = vrot.slane %v643, 1
        %v710 = vsel %vm582, %v707, %v709
        %v711 = vrot.slane %v646, 1
        %v712 = vsel %vm582, %v709, %v711
        %v713 = vrot.slane %v649, 1
        %v714 = vsel %vm582, %v711, %v713
        %v715 = vrot.slane %v652, 1
        %v716 = vsel %vm582, %v713, %v715
        %v717 = vrot.slane %v655, 1
        %v718 = vsel %vm582, %v715, %v717
        %v719 = vrot.slane %v658, 1
        %v720 = vsel %vm582, %v717, %v719
        %v721 = vrot.slane %v661, 1
        %v722 = vsel %vm582, %v719, %v721
        %v723 = vrot.slane 0.0, 1
        %v724 = vsel %vm582, %v721, %v723
        %725 = vrot.lane.b32.xlu0 %v686, 16
        %v726 = vpop.permute.xlu0 %725
        %727 = vrot.lane.b32.xlu0 %v688, 16
        %v728 = vpop.permute.xlu0 %727
        %729 = vrot.lane.b32.xlu0 %v690, 16
        %v730 = vpop.permute.xlu0 %729
        %731 = vrot.lane.b32.xlu0 %v692, 16
        %v732 = vpop.permute.xlu0 %731
        %733 = vrot.lane.b32.xlu0 %v694, 16
        %v734 = vpop.permute.xlu0 %733
        %735 = vrot.lane.b32.xlu0 %v696, 16
        %v736 = vpop.permute.xlu0 %735
        %737 = vrot.lane.b32.xlu0 %v698, 16
        %v738 = vpop.permute.xlu0 %737
        %739 = vrot.lane.b32.xlu0 %v700, 16
        %v740 = vpop.permute.xlu0 %739
        %741 = vrot.lane.b32.xlu0 %v702, 16
        %v742 = vpop.permute.xlu0 %741
        %743 = vrot.lane.b32.xlu0 %v704, 16
        %v744 = vpop.permute.xlu0 %743
        %745 = vrot.lane.b32.xlu0 %v706, 16
        %v746 = vpop.permute.xlu0 %745
        %747 = vrot.lane.b32.xlu0 %v708, 16
        %v748 = vpop.permute.xlu0 %747
        %749 = vrot.lane.b32.xlu0 %v710, 16
        %v750 = vpop.permute.xlu0 %749
        %751 = vrot.lane.b32.xlu0 %v712, 16
        %v752 = vpop.permute.xlu0 %751
        %753 = vrot.lane.b32.xlu0 %v714, 16
        %v754 = vpop.permute.xlu0 %753
        %755 = vrot.lane.b32.xlu0 %v716, 16
        %v756 = vpop.permute.xlu0 %755
        %757 = vrot.lane.b32.xlu0 %v718, 16
        %v758 = vpop.permute.xlu0 %757
        %759 = vrot.lane.b32.xlu0 %v720, 16
        %v760 = vpop.permute.xlu0 %759
        %761 = vrot.lane.b32.xlu0 %v722, 16
        %v762 = vpop.permute.xlu0 %761
        %763 = vrot.lane.b32.xlu0 %v724, 16
        %v764 = vpop.permute.xlu0 %763
        %vm785 = vcmask 1045504
        %v786 = vrot.slane %v604, 2
        %v787 = vrot.slane %v607, 2
        %v788 = vsel %vm785, %v786, %v787
        %v789 = vrot.slane %v610, 2
        %v790 = vsel %vm785, %v787, %v789
        %v791 = vrot.slane %v613, 2
        %v792 = vsel %vm785, %v789, %v791
        %v793 = vrot.slane %v616, 2
        %v794 = vsel %vm785, %v791, %v793
        %v795 = vrot.slane %v619, 2
        %v796 = vsel %vm785, %v793, %v795
        %v797 = vrot.slane %v622, 2
        %v798 = vsel %vm785, %v795, %v797
        %v799 = vrot.slane %v625, 2
        %v800 = vsel %vm785, %v797, %v799
        %v801 = vrot.slane %v628, 2
        %v802 = vsel %vm785, %v799, %v801
        %v803 = vrot.slane %v631, 2
        %v804 = vsel %vm785, %v801, %v803
        %v805 = vrot.slane %v634, 2
        %v806 = vsel %vm785, %v803, %v805
        %v807 = vrot.slane %v637, 2
        %v808 = vsel %vm785, %v805, %v807
        %v809 = vrot.slane %v640, 2
        %v810 = vsel %vm785, %v807, %v809
        %v811 = vrot.slane %v643, 2
        %v812 = vsel %vm785, %v809, %v811
        %v813 = vrot.slane %v646, 2
        %v814 = vsel %vm785, %v811, %v813
        %v815 = vrot.slane %v649, 2
        %v816 = vsel %vm785, %v813, %v815
        %v817 = vrot.slane %v652, 2
        %v818 = vsel %vm785, %v815, %v817
        %v819 = vrot.slane %v655, 2
        %v820 = vsel %vm785, %v817, %v819
        %v821 = vrot.slane %v658, 2
        %v822 = vsel %vm785, %v819, %v821
        %v823 = vrot.slane %v661, 2
        %v824 = vsel %vm785, %v821, %v823
        %v825 = vrot.slane 0.0, 2
        %v826 = vsel %vm785, %v823, %v825
        %827 = vrot.lane.b32.xlu0 %v788, 32
        %v828 = vpop.permute.xlu0 %827
        %829 = vrot.lane.b32.xlu0 %v790, 32
        %v830 = vpop.permute.xlu0 %829
        %831 = vrot.lane.b32.xlu0 %v792, 32
        %v832 = vpop.permute.xlu0 %831
        %833 = vrot.lane.b32.xlu0 %v794, 32
        %v834 = vpop.permute.xlu0 %833
        %835 = vrot.lane.b32.xlu0 %v796, 32
        %v836 = vpop.permute.xlu0 %835
        %837 = vrot.lane.b32.xlu0 %v798, 32
        %v838 = vpop.permute.xlu0 %837
        %839 = vrot.lane.b32.xlu0 %v800, 32
        %v840 = vpop.permute.xlu0 %839
        %841 = vrot.lane.b32.xlu0 %v802, 32
        %v842 = vpop.permute.xlu0 %841
        %843 = vrot.lane.b32.xlu0 %v804, 32
        %v844 = vpop.permute.xlu0 %843
        %845 = vrot.lane.b32.xlu0 %v806, 32
        %v846 = vpop.permute.xlu0 %845
        %847 = vrot.lane.b32.xlu0 %v808, 32
        %v848 = vpop.permute.xlu0 %847
        %849 = vrot.lane.b32.xlu0 %v810, 32
        %v850 = vpop.permute.xlu0 %849
        %851 = vrot.lane.b32.xlu0 %v812, 32
        %v852 = vpop.permute.xlu0 %851
        %853 = vrot.lane.b32.xlu0 %v814, 32
        %v854 = vpop.permute.xlu0 %853
        %855 = vrot.lane.b32.xlu0 %v816, 32
        %v856 = vpop.permute.xlu0 %855
        %857 = vrot.lane.b32.xlu0 %v818, 32
        %v858 = vpop.permute.xlu0 %857
        %859 = vrot.lane.b32.xlu0 %v820, 32
        %v860 = vpop.permute.xlu0 %859
        %861 = vrot.lane.b32.xlu0 %v822, 32
        %v862 = vpop.permute.xlu0 %861
        %863 = vrot.lane.b32.xlu0 %v824, 32
        %v864 = vpop.permute.xlu0 %863
        %865 = vrot.lane.b32.xlu0 %v826, 32
        %v866 = vpop.permute.xlu0 %865
        %vm887 = vcmask 130048
        %v888 = vsel %vm887, %v604, %v726
        %v889 = vsel %vm887, %v607, %v728
        %v890 = vsel %vm887, %v610, %v730
        %v891 = vsel %vm887, %v613, %v732
        %v892 = vsel %vm887, %v616, %v734
        %v893 = vsel %vm887, %v619, %v736
        %v894 = vsel %vm887, %v622, %v738
        %v895 = vsel %vm887, %v625, %v740
        %v896 = vsel %vm887, %v628, %v742
        %v897 = vsel %vm887, %v631, %v744
        %v898 = vsel %vm887, %v634, %v746
        %v899 = vsel %vm887, %v637, %v748
        %v900 = vsel %vm887, %v640, %v750
        %v901 = vsel %vm887, %v643, %v752
        %v902 = vsel %vm887, %v646, %v754
        %v903 = vsel %vm887, %v649, %v756
        %v904 = vsel %vm887, %v652, %v758
        %v905 = vsel %vm887, %v655, %v760
        %v906 = vsel %vm887, %v658, %v762
        %v907 = vsel %vm887, %v661, %v764
        %vm908 = vcmask 261120
        %v909 = vsel %vm908, %v888, %v828
        %v910 = vsel %vm908, %v889, %v830
        %v911 = vsel %vm908, %v890, %v832
        %v912 = vsel %vm908, %v891, %v834
        %v913 = vsel %vm908, %v892, %v836
        %v914 = vsel %vm908, %v893, %v838
        %v915 = vsel %vm908, %v894, %v840
        %v916 = vsel %vm908, %v895, %v842
        %v917 = vsel %vm908, %v896, %v844
        %v918 = vsel %vm908, %v897, %v846
        %v919 = vsel %vm908, %v898, %v848
        %v920 = vsel %vm908, %v899, %v850
        %v921 = vsel %vm908, %v900, %v852
        %v922 = vsel %vm908, %v901, %v854
        %v923 = vsel %vm908, %v902, %v856
        %v924 = vsel %vm908, %v903, %v858
        %v925 = vsel %vm908, %v904, %v860
        %v926 = vsel %vm908, %v905, %v862
        %v927 = vsel %vm908, %v906, %v864
        %v928 = vsel %vm908, %v907, %v866
        %v929 = vld [vmem:[%s4] sm:$0xff]
        %v930 = vld [vmem:[%s4 + $0x8] sm:$0xff]
        %v931 = vld [vmem:[%s4 + $0x10] sm:$0xff]
        %v932 = vld [vmem:[%s4 + $0x18] sm:$0xff]
        %v933 = vld [vmem:[%s4 + $0x20] sm:$0xff]
        %v934 = vld [vmem:[%s4 + $0x28] sm:$0xff]
        %v935 = vld [vmem:[%s5] sm:$0x1]
        %v937 = vperm.slane %v935, 0
        %vm939 = vcmask 392192
        %v941 = vsel %vm939, %v909, 0
        %v944 = vsel %vm939, %v910, 0
        %v947 = vsel %vm939, %v911, 0
        %v950 = vsel %vm939, %v912, 0
        %v953 = vsel %vm939, %v913, 0
        %v956 = vsel %vm939, %v914, 0
        %v959 = vsel %vm939, %v915, 0
        %v962 = vsel %vm939, %v916, 0
        %v965 = vsel %vm939, %v917, 0
        %v968 = vsel %vm939, %v918, 0
        %v971 = vsel %vm939, %v919, 0
        %v974 = vsel %vm939, %v920, 0
        %v977 = vsel %vm939, %v921, 0
        %v980 = vsel %vm939, %v922, 0
        %v983 = vsel %vm939, %v923, 0
        %v986 = vsel %vm939, %v924, 0
        %v989 = vsel %vm939, %v925, 0
        %v992 = vsel %vm939, %v926, 0
        %v995 = vsel %vm939, %v927, 0
        %v998 = vsel %vm939, %v928, 0
        %1000 = vmatpush.msra.mxu0 0.0
        %1001 = vmatpush.msra.mxu0 0.0
        %1002 = vmatpush.msra.mxu0 0.0
        %1003 = vmatpush.msra.mxu0 0.0
        %1004 = vmatpush.msra.mxu0 0.0
        %1005 = vmatpush.msra.mxu0 0.0
        %1006 = vmatpush.msra.mxu0 0.0
        %1007 = vmatpush.msra.mxu0 0.0
        %1008 = vmatpush.msra.mxu0 0.0
        %1009 = vmatpush.msra.mxu0 0.0
        %1010 = vmatpush.msra.mxu0 %v934
        %1011 = vmatpush.msra.mxu0 %v933
        %1012 = vmatpush.msra.mxu0 %v932
        %1013 = vmatpush.msra.mxu0 %v931
        %1014 = vmatpush.msra.mxu0 %v930
        %1015 = vmatpush.msra.mxu0 %v929
        %1016 = vmatmul.f32.gmra.mxu0 %v941
        %v1017 = vpop.f32.mrf.mxu0
        %v1018 = vadd.f32 %v937, %v1017
        %1019 = vmatmul.f32.gmra.mxu0 %v944
        %v1020 = vpop.f32.mrf.mxu0
        %v1021 = vadd.f32 %v937, %v1020
        %1022 = vmatmul.f32.gmra.mxu0 %v947
        %v1023 = vpop.f32.mrf.mxu0
        %v1024 = vadd.f32 %v937, %v1023
        %1025 = vmatmul.f32.gmra.mxu0 %v950
        %v1026 = vpop.f32.mrf.mxu0
        %v1027 = vadd.f32 %v937, %v1026
        %1028 = vmatmul.f32.gmra.mxu0 %v953
        %v1029 = vpop.f32.mrf.mxu0
        %v1030 = vadd.f32 %v937, %v1029
        %1031 = vmatmul.f32.gmra.mxu0 %v956
        %v1032 = vpop.f32.mrf.mxu0
        %v1033 = vadd.f32 %v937, %v1032
        %1034 = vmatmul.f32.gmra.mxu0 %v959
        %v1035 = vpop.f32.mrf.mxu0
        %v1036 = vadd.f32 %v937, %v1035
        %1037 = vmatmul.f32.gmra.mxu0 %v962
        %v1038 = vpop.f32.mrf.mxu0
        %v1039 = vadd.f32 %v937, %v1038
        %1040 = vmatmul.f32.gmra.mxu0 %v965
        %v1041 = vpop.f32.mrf.mxu0
        %v1042 = vadd.f32 %v937, %v1041
        %1043 = vmatmul.f32.gmra.mxu0 %v968
        %v1044 = vpop.f32.mrf.mxu0
        %v1045 = vadd.f32 %v937, %v1044
        %1046 = vmatmul.f32.gmra.mxu0 %v971
        %v1047 = vpop.f32.mrf.mxu0
        %v1048 = vadd.f32 %v937, %v1047
        %1049 = vmatmul.f32.gmra.mxu0 %v974
        %v1050 = vpop.f32.mrf.mxu0
        %v1051 = vadd.f32 %v937, %v1050
        %1052 = vmatmul.f32.gmra.mxu0 %v977
        %v1053 = vpop.f32.mrf.mxu0
        %v1054 = vadd.f32 %v937, %v1053
        %1055 = vmatmul.f32.gmra.mxu0 %v980
        %v1056 = vpop.f32.mrf.mxu0
        %v1057 = vadd.f32 %v937, %v1056
        %1058 = vmatmul.f32.gmra.mxu0 %v983
        %v1059 = vpop.f32.mrf.mxu0
        %v1060 = vadd.f32 %v937, %v1059
        %1061 = vmatmul.f32.gmra.mxu0 %v986
        %v1062 = vpop.f32.mrf.mxu0
        %v1063 = vadd.f32 %v937, %v1062
        %1064 = vmatmul.f32.gmra.mxu0 %v989
        %v1065 = vpop.f32.mrf.mxu0
        %v1066 = vadd.f32 %v937, %v1065
        %1067 = vmatmul.f32.gmra.mxu0 %v992
        %v1068 = vpop.f32.mrf.mxu0
        %v1069 = vadd.f32 %v937, %v1068
        %1070 = vmatmul.f32.gmra.mxu0 %v995
        %v1071 = vpop.f32.mrf.mxu0
        %v1072 = vadd.f32 %v937, %v1071
        %1073 = vmatmul.f32.gmra.mxu0 %v998
        %v1074 = vpop.f32.mrf.mxu0
        %v1075 = vadd.f32 %v937, %v1074
        %1076 = vdwg.mxu0
        %v1077 = vsel %vm908, %v1018, -inf
        %v1078 = vsel %vm908, %v1021, -inf
        %vm1079 = vcmask 254976
        %v1080 = vsel %vm1079, %v1024, -inf
        %v1081 = vmax.f32 %v1077, %v1078
        %v1082 = vmax.f32 %v1081, %v1080
        %v1083 = vrot.slane %v1082, 4
        %v1084 = vmax.f32 %v1082, %v1083
        %v1085 = vrot.slane %v1084, 2
        %v1086 = vmax.f32 %v1084, %v1085
        %v1087 = vrot.slane %v1086, 1
        %v1088 = vmax.f32 %v1086, %v1087
        %vm1089 = vcmask 261124
        %v1090 = vsel %vm1089, %v1024, -inf
        %v1091 = vsel %vm908, %v1027, -inf
        %vm1092 = vcmask 259072
        %v1093 = vsel %vm1092, %v1030, -inf
        %v1094 = vmax.f32 %v1090, %v1091
        %v1095 = vmax.f32 %v1094, %v1093
        %v1096 = vrot.slane %v1095, 4
        %v1097 = vmax.f32 %v1095, %v1096
        %v1098 = vrot.slane %v1097, 2
        %v1099 = vmax.f32 %v1097, %v1098
        %v1100 = vrot.slane %v1099, 1
        %v1101 = vmax.f32 %v1099, %v1100
        %v1102 = vsel %vm908, %v1033, -inf
        %v1103 = vsel %vm908, %v1036, -inf
        %v1104 = vsel %vm1079, %v1039, -inf
        %v1105 = vmax.f32 %v1102, %v1103
        %v1106 = vmax.f32 %v1105, %v1104
        %v1107 = vrot.slane %v1106, 4
        %v1108 = vmax.f32 %v1106, %v1107
        %v1109 = vrot.slane %v1108, 2
        %v1110 = vmax.f32 %v1108, %v1109
        %v1111 = vrot.slane %v1110, 1
        %v1112 = vmax.f32 %v1110, %v1111
        %v1113 = vsel %vm1089, %v1039, -inf
        %v1114 = vsel %vm908, %v1042, -inf
        %v1115 = vsel %vm1092, %v1045, -inf
        %v1116 = vmax.f32 %v1113, %v1114
        %v1117 = vmax.f32 %v1116, %v1115
        %v1118 = vrot.slane %v1117, 4
        %v1119 = vmax.f32 %v1117, %v1118
        %v1120 = vrot.slane %v1119, 2
        %v1121 = vmax.f32 %v1119, %v1120
        %v1122 = vrot.slane %v1121, 1
        %v1123 = vmax.f32 %v1121, %v1122
        %v1124 = vsel %vm908, %v1048, -inf
        %v1125 = vsel %vm908, %v1051, -inf
        %v1126 = vsel %vm1079, %v1054, -inf
        %v1127 = vmax.f32 %v1124, %v1125
        %v1128 = vmax.f32 %v1127, %v1126
        %v1129 = vrot.slane %v1128, 4
        %v1130 = vmax.f32 %v1128, %v1129
        %v1131 = vrot.slane %v1130, 2
        %v1132 = vmax.f32 %v1130, %v1131
        %v1133 = vrot.slane %v1132, 1
        %v1134 = vmax.f32 %v1132, %v1133
        %v1135 = vsel %vm1089, %v1054, -inf
        %v1136 = vsel %vm908, %v1057, -inf
        %v1137 = vsel %vm1092, %v1060, -inf
        %v1138 = vmax.f32 %v1135, %v1136
        %v1139 = vmax.f32 %v1138, %v1137
        %v1140 = vrot.slane %v1139, 4
        %v1141 = vmax.f32 %v1139, %v1140
        %v1142 = vrot.slane %v1141, 2
        %v1143 = vmax.f32 %v1141, %v1142
        %v1144 = vrot.slane %v1143, 1
        %v1145 = vmax.f32 %v1143, %v1144
        %v1146 = vsel %vm908, %v1063, -inf
        %v1147 = vsel %vm908, %v1066, -inf
        %v1148 = vsel %vm1079, %v1069, -inf
        %v1149 = vmax.f32 %v1146, %v1147
        %v1150 = vmax.f32 %v1149, %v1148
        %v1151 = vrot.slane %v1150, 4
        %v1152 = vmax.f32 %v1150, %v1151
        %v1153 = vrot.slane %v1152, 2
        %v1154 = vmax.f32 %v1152, %v1153
        %v1155 = vrot.slane %v1154, 1
        %v1156 = vmax.f32 %v1154, %v1155
        %v1157 = vsel %vm1089, %v1069, -inf
        %v1158 = vsel %vm908, %v1072, -inf
        %v1159 = vsel %vm1092, %v1075, -inf
        %v1160 = vmax.f32 %v1157, %v1158
        %v1161 = vmax.f32 %v1160, %v1159
        %v1162 = vrot.slane %v1161, 4
        %v1163 = vmax.f32 %v1161, %v1162
        %v1164 = vrot.slane %v1163, 2
        %v1165 = vmax.f32 %v1163, %v1164
        %v1166 = vrot.slane %v1165, 1
        %v1167 = vmax.f32 %v1165, %v1166
        %vm1168 = vcmask 1040384
        %v1169 = vsel %vm1168, %v1088, %v1101
        %vm1170 = vcmask 1041408
        %v1171 = vsel %vm1170, %v1169, %v1112
        %vm1172 = vcmask 1042432
        %v1173 = vsel %vm1172, %v1171, %v1123
        %vm1174 = vcmask 1043456
        %v1175 = vsel %vm1174, %v1173, %v1134
        %vm1176 = vcmask 1044480
        %v1177 = vsel %vm1176, %v1175, %v1145
        %v1178 = vsel %vm785, %v1177, %v1156
        %v1179 = vsel %vm582, %v1178, %v1167
        %v1180 = vld [vmem:[%s374] sm:$0xff]
        %1181 = vset.pattern.permute.xlu0 0
        %1182 = vperm.xlu0 %1181, %v1180
        %v1183 = vpop.permute.xlu0 %1182
        %vm1184 = vcmp.eq.s32.totalorder %v1183, %v396
        %v1185 = vsel %vm1184, 1, 0
        %v1186 = vcvt.s32.f32 %v1185
        %v1187 = vld [vmem:[%s3] sm:$0xff]
        %v1188 = vld [vmem:[%s3 + $0x8] sm:$0xff]
        %v1189 = vld [vmem:[%s3 + $0x10] sm:$0xff]
        %v1190 = vld [vmem:[%s3 + $0x18] sm:$0xff]
        %v1191 = vld [vmem:[%s3 + $0x20] sm:$0xff]
        %v1192 = vld [vmem:[%s3 + $0x28] sm:$0xff]
        %v1193 = vld [vmem:[%s3 + $0x30] sm:$0x7]
        %vm1194 = vcmask 416768
        %v1196 = vsel %vm1194, %v1186, 0
        %v1199 = vsel %vm1172, %v1193, 0
        %1201 = vmatpush.msra.mxu0 0.0
        %1202 = vmatpush.msra.mxu0 0.0
        %1203 = vmatpush.msra.mxu0 0.0
        %1204 = vmatpush.msra.mxu0 0.0
        %1205 = vmatpush.msra.mxu0 0.0
        %1206 = vmatpush.msra.mxu0 0.0
        %1207 = vmatpush.msra.mxu0 0.0
        %1208 = vmatpush.msra.mxu0 0.0
        %1209 = vmatpush.msra.mxu0 0.0
        %1210 = vmatpush.msra.mxu0 %v1199
        %1211 = vmatpush.msra.mxu0 %v1192
        %1212 = vmatpush.msra.mxu0 %v1191
        %1213 = vmatpush.msra.mxu0 %v1190
        %1214 = vmatpush.msra.mxu0 %v1189
        %1215 = vmatpush.msra.mxu0 %v1188
        %1216 = vmatpush.msra.mxu0 %v1187
        %1217 = vmatmul.f32.gmra.mxu0 %v1196
        %v1218 = vpop.f32.mrf.mxu0
        %v1219 = vadd.f32 0.0, %v1218
        %1220 = vdwg.mxu0
        %1222 = vrot.lane.b32.xlu0 %v1179, 32
        %v1223 = vpop.permute.xlu0 %1222
        %v1225 = vsel %vm908, %v1219, %v1223
        %v1227 = vrot.slane %v1225, 7
        %v1229 = vsel %vm1168, 0.0, %v1227
        %v1230 = vsel %vm1168, %v1227, 0.0
        %v1233 = vrot.slane %v1229, 1
        %v1234 = vrot.slane %v1230, 1
        %v1235 = vsel %vm582, %v1233, %v1234
        %1236 = vrot.lane.b32.xlu0 %v1235, 64
        %v1237 = vpop.permute.xlu0 %1236
        %v1239 = vrot.slane %v1229, 2
        %v1240 = vrot.slane %v1230, 2
        %v1241 = vsel %vm785, %v1239, %v1240
        %vm1242 = vcmask 523264
        %v1243 = vsel %vm1242, %v1229, %v1237
        %v1244 = vld [vmem:[%s6] sm:$0xff]
        %v1245 = vld [vmem:[%s6 + $0x8] sm:$0xff]
        %v1246 = vld [vmem:[%s6 + $0x10] sm:$0xff]
        %v1247 = vld [vmem:[%s6 + $0x18] sm:$0xff]
        %v1248 = vld [vmem:[%s6 + $0x20] sm:$0xff]
        %v1249 = vld [vmem:[%s6 + $0x28] sm:$0xff]
        %v1250 = vld [vmem:[%s6 + $0x30] sm:$0xff]
        %v1251 = vld [vmem:[%s6 + $0x38] sm:$0xff]
        %v1252 = vld [vmem:[%s6 + $0x40] sm:$0xff]
        %v1253 = vld [vmem:[%s6 + $0x48] sm:$0xff]
        %v1254 = vld [vmem:[%s6 + $0x50] sm:$0xff]
        %v1255 = vld [vmem:[%s6 + $0x58] sm:$0xff]
        %v1256 = vld [vmem:[%s6 + $0x60] sm:$0xff]
        %v1257 = vld [vmem:[%s6 + $0x68] sm:$0xff]
        %v1258 = vld [vmem:[%s6 + $0x70] sm:$0xff]
        %v1259 = vld [vmem:[%s6 + $0x78] sm:$0xff]
        %v1260 = vld [vmem:[%s6 + $0x80] sm:$0xff]
        %v1261 = vld [vmem:[%s6 + $0x88] sm:$0xff]
        %v1262 = vld [vmem:[%s6 + $0x90] sm:$0xff]
        %v1263 = vld [vmem:[%s6 + $0x98] sm:$0xff]
        %v1264 = vld [vmem:[%s6 + $0xa0] sm:$0xff]
        %v1265 = vld [vmem:[%s6 + $0xa8] sm:$0xff]
        %v1266 = vld [vmem:[%s6 + $0xb0] sm:$0xff]
        %v1267 = vld [vmem:[%s6 + $0xb8] sm:$0xff]
        %v1268 = vld [vmem:[%s7] sm:$0x1]
        %v1270 = vperm.slane %v1268, 0
        %v1272 = vsel %vm1242, %v1241, 0
        %1274 = vmatpush.msra.mxu0 %v1259
        %1275 = vmatpush.msra.mxu0 %v1258
        %1276 = vmatpush.msra.mxu0 %v1257
        %1277 = vmatpush.msra.mxu0 %v1256
        %1278 = vmatpush.msra.mxu0 %v1255
        %1279 = vmatpush.msra.mxu0 %v1254
        %1280 = vmatpush.msra.mxu0 %v1253
        %1281 = vmatpush.msra.mxu0 %v1252
        %1282 = vmatpush.msra.mxu0 %v1251
        %1283 = vmatpush.msra.mxu0 %v1250
        %1284 = vmatpush.msra.mxu0 %v1249
        %1285 = vmatpush.msra.mxu0 %v1248
        %1286 = vmatpush.msra.mxu0 %v1247
        %1287 = vmatpush.msra.mxu0 %v1246
        %1288 = vmatpush.msra.mxu0 %v1245
        %1289 = vmatpush.msra.mxu0 %v1244
        %1290 = vmatmul.f32.gmra.mxu0 %v1243
        %v1291 = vpop.f32.mrf.mxu0
        %v1292 = vadd.f32 %v1270, %v1291
        %1293 = vdwg.mxu0
        %1294 = vmatpush.msra.mxu0 0.0
        %1295 = vmatpush.msra.mxu0 0.0
        %1296 = vmatpush.msra.mxu0 0.0
        %1297 = vmatpush.msra.mxu0 0.0
        %1298 = vmatpush.msra.mxu0 0.0
        %1299 = vmatpush.msra.mxu0 0.0
        %1300 = vmatpush.msra.mxu0 0.0
        %1301 = vmatpush.msra.mxu0 0.0
        %1302 = vmatpush.msra.mxu0 %v1267
        %1303 = vmatpush.msra.mxu0 %v1266
        %1304 = vmatpush.msra.mxu0 %v1265
        %1305 = vmatpush.msra.mxu0 %v1264
        %1306 = vmatpush.msra.mxu0 %v1263
        %1307 = vmatpush.msra.mxu0 %v1262
        %1308 = vmatpush.msra.mxu0 %v1261
        %1309 = vmatpush.msra.mxu0 %v1260
        %1310 = vmatmul.f32.gmra.mxu0 %v1272
        %v1311 = vpop.f32.mrf.mxu0
        %v1312 = vadd.f32 %v1292, %v1311
        %1313 = vdwg.mxu0
        %v1314 = vld [vmem:[%s8] sm:$0xff]
        %v1315 = vld [vmem:[%s8 + $0x8] sm:$0xff]
        %v1316 = vld [vmem:[%s8 + $0x10] sm:$0xff]
        %v1317 = vld [vmem:[%s8 + $0x18] sm:$0xff]
        %v1318 = vld [vmem:[%s8 + $0x20] sm:$0xff]
        %v1319 = vld [vmem:[%s8 + $0x28] sm:$0xff]
        %v1320 = vld [vmem:[%s8 + $0x30] sm:$0xff]
        %v1321 = vld [vmem:[%s8 + $0x38] sm:$0xff]
        %v1322 = vld [vmem:[%s9] sm:$0x1]
        %v1324 = vperm.slane %v1322, 0
        %v1327 = vsel %vm1242, %v1312, 0
        %1329 = vmatpush.msra.mxu0 0.0
        %1330 = vmatpush.msra.mxu0 0.0
        %1331 = vmatpush.msra.mxu0 0.0
        %1332 = vmatpush.msra.mxu0 0.0
        %1333 = vmatpush.msra.mxu0 0.0
        %1334 = vmatpush.msra.mxu0 0.0
        %1335 = vmatpush.msra.mxu0 0.0
        %1336 = vmatpush.msra.mxu0 0.0
        %1337 = vmatpush.msra.mxu0 %v1321
        %1338 = vmatpush.msra.mxu0 %v1320
        %1339 = vmatpush.msra.mxu0 %v1319
        %1340 = vmatpush.msra.mxu0 %v1318
        %1341 = vmatpush.msra.mxu0 %v1317
        %1342 = vmatpush.msra.mxu0 %v1316
        %1343 = vmatpush.msra.mxu0 %v1315
        %1344 = vmatpush.msra.mxu0 %v1314
        %1345 = vmatmul.f32.gmra.mxu0 %v1327
        %v1346 = vpop.f32.mrf.mxu0
        %v1347 = vadd.f32 %v1324, %v1346
        %1348 = vdwg.mxu0
        %1349 = vst [vmem:[%s365] sm:$0xff] %v1347
        %s1350 = sand.u32 %s252, 1
        %s1351 = scalar_lea.sflag [#allocation3], %s1350
        %s1352 = sand.u32 %s252, 1
        %s1353 = smul.addr %s1352, 8
        %s1354 = scalar_lea.vmem [#allocation2], %s1353
        // Predicated region
        $region61: #{bilstm_crf_forward.1} parent=59 // pred_check
          %p1355 = pneg %p262
        $region62: #{bilstm_crf_forward.1} parent=59 // pred_check_branch
          %1357 = sbr.rel (%p1355) target = $region64
        $region63: #{bilstm_crf_forward.1} parent=59 // pred_region
          %1359 = vsyncadd %s1351, 0
          %s1360 = smul.addr %s24, 8
          %s1361 = scalar_lea.hbm %s10, %s1360
          %s1363 = sshll.u32 %s1354, 4
          %s1364 = int_to_ptr.vmem [resolvable:$true] %s1363
          %s1365 = sshll.u32 %s1361, 4
          %s1366 = int_to_ptr.hbm [resolvable:$true] %s1365
          %1368 = dma.vmem_to_hbm [thread:$0]  %s1364, 128, %s1366, %s1351
        $region64: #{bilstm_crf_forward.1} parent=59 // pred_fallthru
          _
      $region60: #{bilstm_crf_forward.1} parent=5 // pred_fallthru
        _
      %p1369 = scmp.le.s32.totalorder 2, %s19
      // Predicated region
      $region65: #{bilstm_crf_forward.1} parent=5 // pred_check
        %p1370 = pneg %p1369
      $region66: #{bilstm_crf_forward.1} parent=5 // pred_check_branch
        %1372 = sbr.rel (%p1370) target = $region68
      $region67: #{bilstm_crf_forward.1} parent=5 // pred_region
        %s1373 = ssub.s32 %s19, 2
        // Predicated region
        $region69: #{bilstm_crf_forward.1} parent=67 // pred_check
          %p1374 = pneg %p268
        $region70: #{bilstm_crf_forward.1} parent=67 // pred_check_branch
          %1376 = sbr.rel (%p1374) target = $region72
        $region71: #{bilstm_crf_forward.1} parent=67 // pred_region
          %s1377 = sand.u32 %s253, 1
          %s1378 = scalar_lea.sflag [#allocation3], %s1377
          %s1379 = sand.u32 %s253, 1
          %s1380 = smul.addr %s1379, 8
          %s1381 = scalar_lea.vmem [#allocation2], %s1380
          %1383 = dma.done %s1378, 128
        $region72: #{bilstm_crf_forward.1} parent=67 // pred_fallthru
          _
      $region68: #{bilstm_crf_forward.1} parent=5 // pred_fallthru
        _
    $region6: #{bilstm_crf_forward.1} parent=1 // loop_footer
      %s23 = sadd.s32 1, %s19
    $region7: #{bilstm_crf_forward.1} parent=1 // loop_footer_branch
      %18 = sbr.rel target = $region3
    $region8: #{bilstm_crf_forward.1} parent=1 // loop_exit
      _
    %1384 = vsyncpa [#allocation3], 1
    %s1385 = scalar_lea.sflag [#allocation3], 1
    %1386 = vsyncpa %s1385, 1

</llo_original>
